<compile_context>
chip_gen: v7x
topology: tpu7x:2x2x1
jax: 0.10.0
libtpu: 0.0.40
codegen_flags: <defaults>
</compile_context>

<pallas_src>
import math
import numpy as np
import jax
import jax.numpy as jnp
from jax.experimental import pallas as pl
from jax.experimental.pallas import tpu as pltpu

# ----------------------------- configuration ------------------------------
D_MODEL = 32
D_QK = 8
D_V = 8          # equals D_QK (the PyTorch module reuses W_Q for V)
N_HEADS = 4
D_FF = 64
KERNEL_SIZE = 3
DROPOUT = 0.0    # TODO(synk): bernoulli score-masking omitted; with dropout=0.0 it is exactly zero
BS = 2
S = 8            # decoder / encoder sequence length
T = S + 1        # rows per batch element: cat(h0, input) along time
LN_EPS = 1e-5
NEG_INF = -1e9


# ----------------------------- in-kernel math ------------------------------
def _erf(x):
    # Abramowitz & Stegun 7.1.26 rational approximation (max abs err ~1.5e-7).
    a1, a2, a3, a4, a5 = 0.254829592, -0.284496736, 1.421413741, -1.453152027, 1.061405429
    p = 0.3275911
    sgn = jnp.where(x >= 0.0, 1.0, -1.0)
    ax = jnp.abs(x)
    t = 1.0 / (1.0 + p * ax)
    poly = ((((a5 * t + a4) * t + a3) * t + a2) * t + a1) * t
    return sgn * (1.0 - poly * jnp.exp(-ax * ax))


def _gelu(x):
    # exact (erf-based) GELU, matching torch.nn.GELU() default
    return 0.5 * x * (1.0 + _erf(x * 0.7071067811865476))


def _layernorm(x, g, b):
    mu = jnp.mean(x, axis=-1, keepdims=True)
    xc = x - mu
    var = jnp.mean(xc * xc, axis=-1, keepdims=True)
    return xc * jax.lax.rsqrt(var + LN_EPS) * g + b


# ------------------------------- the kernel --------------------------------
# Single program; processes all bs*(S+1) rows at once.
#
# Weight slab wp (d_model, 6*dm + d_ff + max(d_ff, dm)):
#   cols 0:dm        M1   = c1 @ wq1 @ fc1            (block 1 fully collapsed)
#   cols dm:2dm      CQ2  = (c2 @ wq2)/sqrt(d_qk)     (block 2 query, scale folded)
#   cols 2dm:4dm     WKV2 = [wk2 | wq2]               (block 2 fused K/V projection)
#   cols 4dm:5dm     FC2
#   cols 5dm:6dm     M3   = wq3 @ fc3                 (block 3 fully collapsed)
#   cols 6dm:6dm+dff W1
#   misc block       rows 0..7: g1,be1,g2,be2,g3,be3,g4,be4 ; row 8: b1 ; row 9: b2
def make_kernel(bs, seq, dm, dq, nheads, dff):
    steps = seq + 1
    rows = bs * steps
    miscw = max(dff, dm)

    def kernel(x0_ref, wp_ref, w2_ref, mask_ref, y_ref, hn_ref):
        x0 = x0_ref[...]                      # (rows, dm): flattened cat(h0, input)
        wp = wp_ref[...]
        m1 = wp[:, 0:dm]
        cq2 = wp[:, dm:2 * dm]
        wkv2 = wp[:, 2 * dm:4 * dm]
        fc2 = wp[:, 4 * dm:5 * dm]
        m3 = wp[:, 5 * dm:6 * dm]
        w1 = wp[:, 6 * dm:6 * dm + dff]
        misc = wp[:, 6 * dm + dff:6 * dm + dff + miscw]
        g1, be1 = misc[0:1, 0:dm], misc[1:2, 0:dm]
        g2, be2 = misc[2:3, 0:dm], misc[3:4, 0:dm]
        g3, be3 = misc[4:5, 0:dm], misc[5:6, 0:dm]
        g4, be4 = misc[6:7, 0:dm], misc[7:8, 0:dm]
        b1 = misc[8:9, 0:dff]
        b2 = misc[9:10, 0:dm]
        mask = mask_ref[...]                  # (rows, rows) additive block-diag mask

        # --- block 1: conv1 + single-key context attention, collapsed to one matmul ---
        x1 = _layernorm(jnp.dot(x0, m1, preferred_element_type=jnp.float32) + x0, g1, be1)

        # --- block 2: global attention over `input` (conv2 + scale folded into query) ---
        q2 = jnp.dot(x1, cq2, preferred_element_type=jnp.float32)     # (rows, H*dq)
        kv2 = jnp.dot(x0, wkv2, preferred_element_type=jnp.float32)   # (rows, 2*H*dq), K|V fused
        k2 = kv2[:, 0:dm]
        v2 = kv2[:, dm:2 * dm]
        heads = []
        for h in range(nheads):               # static lane slices; all rows at once
            lo, hi = h * dq, (h + 1) * dq
            qh = q2[:, lo:hi]
            kh = k2[:, lo:hi]
            vh = v2[:, lo:hi]
            s = jax.lax.dot_general(qh, kh, (((1,), (1,)), ((), ())),
                                    preferred_element_type=jnp.float32) + mask
            s = s - jnp.max(s, axis=-1, keepdims=True)
            p = jnp.exp(s)
            p = p * pl.reciprocal(jnp.sum(p, axis=-1, keepdims=True), approx=True)
            heads.append(jnp.dot(p, vh, preferred_element_type=jnp.float32))
        attn = jnp.concatenate(heads, axis=-1)                         # (rows, H*dv)
        x2 = _layernorm(jnp.dot(attn, fc2, preferred_element_type=jnp.float32) + x1, g2, be2)

        # --- block 3: single-key cross attention, collapsed to one matmul ---
        h3 = jnp.dot(x2, m3, preferred_element_type=jnp.float32)       # == h at each step
        x3 = _layernorm(h3 + x2, g3, be3)

        # --- block 4: MLP (Linear-GELU-Linear) + LN4 ---
        y = jnp.dot(x3, w1, preferred_element_type=jnp.float32) + b1
        y = _gelu(y)
        y = jnp.dot(y, w2_ref[...], preferred_element_type=jnp.float32) + b2
        y_ref[...] = _layernorm(y + x3, g4, be4)

        # hn returned by torch == h of the LAST step of each batch element
        hn_ref[...] = jnp.concatenate(
            [h3[b * steps + seq:b * steps + seq + 1, :] for b in range(bs)], axis=0)

    return kernel


# ------------------------------ host wrapper --------------------------------
def conv1d_as_matrix(w, length, k):
    """(length, length) matrix M with (x @ M)[l] == Conv1d(1,1,k,padding=(k-1)//2)(x)[l]."""
    p = (k - 1) // 2
    m = jnp.arange(length)[:, None]
    l = jnp.arange(length)[None, :]
    j = m - l + p
    valid = (j >= 0) & (j < k)
    jc = jnp.clip(j, 0, k - 1)
    return jnp.where(valid, w[jc], 0.0).astype(jnp.float32)


def init_params(key):
    def lin(k, fan_in, shape):
        s = 1.0 / math.sqrt(fan_in)
        return jax.random.uniform(k, shape, jnp.float32, -s, s)

    keys = jax.random.split(key, 32)
    p = {}
    c1w = lin(keys[0], KERNEL_SIZE, (KERNEL_SIZE,))
    c2w = lin(keys[1], KERNEL_SIZE, (KERNEL_SIZE,))
    p['c1'] = conv1d_as_matrix(c1w, D_MODEL, KERNEL_SIZE)
    p['c2'] = conv1d_as_matrix(c2w, D_MODEL, KERNEL_SIZE)

    ki = 2
    for blk in ('1', '2', '3'):
        p['wq' + blk] = lin(keys[ki], D_MODEL, (D_MODEL, N_HEADS * D_QK)); ki += 1
        p['wk' + blk] = lin(keys[ki], D_MODEL, (D_MODEL, N_HEADS * D_QK)); ki += 1
        p['fc' + blk] = lin(keys[ki], N_HEADS * D_V, (N_HEADS * D_V, D_MODEL)); ki += 1
    # NOTE: W_V and the per-attention LayerNorm exist in __init__ but are unused in forward.

    p['w1'] = lin(keys[ki], D_MODEL, (D_MODEL, D_FF)); ki += 1
    p['b1'] = lin(keys[ki], D_MODEL, (1, D_FF)); ki += 1
    p['w2'] = lin(keys[ki], D_FF, (D_FF, D_MODEL)); ki += 1
    p['b2'] = lin(keys[ki], D_FF, (1, D_MODEL)); ki += 1

    for n in range(1, 5):
        p['g' + str(n)] = jnp.ones((1, D_MODEL), jnp.float32)      # torch LayerNorm default
        p['be' + str(n)] = jnp.zeros((1, D_MODEL), jnp.float32)
    return p


def fold_params(p):
    """Host-side exact weight folding + packing into a single slab (+ w2)."""
    dm, dff = D_MODEL, D_FF
    assert dm >= 10, "misc block needs at least 10 rows"
    m1 = p['c1'] @ p['wq1'] @ p['fc1']                        # block 1 collapsed
    cq2 = (p['c2'] @ p['wq2']) * (1.0 / math.sqrt(D_QK))      # conv2 + softmax scale folded
    wkv2 = jnp.concatenate([p['wk2'], p['wq2']], axis=1)      # fused K|V (V reuses W_Q)
    m3 = p['wq3'] @ p['fc3']                                  # block 3 collapsed

    miscw = max(dff, dm)
    ln = jnp.concatenate([p['g1'], p['be1'], p['g2'], p['be2'],
                          p['g3'], p['be3'], p['g4'], p['be4']], axis=0)   # (8, dm)
    misc = jnp.zeros((dm, miscw), jnp.float32)
    misc = misc.at[0:8, 0:dm].set(ln)
    misc = misc.at[8:9, 0:dff].set(p['b1'])
    misc = misc.at[9:10, 0:dm].set(p['b2'])

    wpack = jnp.concatenate([m1, cq2, wkv2, p['fc2'], m3, p['w1'], misc], axis=1)
    return wpack, p['w2']


def build_attn_mask(bs, steps):
    """Additive mask for the flattened (bs*steps, bs*steps) block-2 attention.

    A key column is valid iff it belongs to the same batch element as the query row
    AND it is an `input` row (not the prepended h0 row)."""
    rows = bs * steps
    r = np.arange(rows)
    same_batch = (r[:, None] // steps) == (r[None, :] // steps)
    key_is_input = (r[None, :] % steps) != 0
    valid = same_batch & key_is_input
    return jnp.asarray(np.where(valid, 0.0, NEG_INF), dtype=jnp.float32)


def tldecoder_forward(params, inp, enc_out, h0):
    # enc_out is provably unused: block 3 attends over a single key, so the encoder
    # token (the query) cannot influence the output.  Kept in the signature for parity.
    del enc_out
    bs, seq, dm = inp.shape
    steps = seq + 1
    rows = bs * steps

    x0 = jnp.concatenate([h0, inp], axis=1).reshape(rows, dm)   # flattened cat(h0, input)
    wpack, w2 = fold_params(params)
    mask = build_attn_mask(bs, steps)

    kernel = make_kernel(bs, seq, dm, D_QK, N_HEADS, D_FF)

    grid_spec = pltpu.PrefetchScalarGridSpec(
        num_scalar_prefetch=0,
        grid=(1,),
        in_specs=[
            pl.BlockSpec(x0.shape, lambda i: (0, 0)),
            pl.BlockSpec(wpack.shape, lambda i: (0, 0)),
            pl.BlockSpec(w2.shape, lambda i: (0, 0)),
            pl.BlockSpec(mask.shape, lambda i: (0, 0)),
        ],
        out_specs=[
            pl.BlockSpec((rows, dm), lambda i: (0, 0)),
            pl.BlockSpec((bs, dm), lambda i: (0, 0)),
        ],
    )

    y_flat, hn = pl.pallas_call(
        kernel,
        out_shape=(jax.ShapeDtypeStruct((rows, dm), jnp.float32),
                   jax.ShapeDtypeStruct((bs, dm), jnp.float32)),
        grid_spec=grid_spec,
        compiler_params=pltpu.CompilerParams(dimension_semantics=("arbitrary",)),
    )(x0, wpack, w2, mask)

    # torch: output = cat(ones, y_0, ..., y_{T-1})[:, 2:, :]  ==  y_1..y_{T-1}
    y = y_flat.reshape(bs, steps, dm)[:, 1:, :]
    return y, hn.reshape(bs, 1, dm)


# --------------------------- pure-JAX reference -----------------------------
# Un-optimized, literal translation of the PyTorch forward (full single-key
# attentions, explicit hn recurrence, conv matmuls) to verify the algebraic
# collapse used by the kernel is exact.
def _mha_ref(q3, k3, v3, wq, wk, fc):
    bs = q3.shape[0]
    Q = (q3 @ wq).reshape(bs, -1, N_HEADS, D_QK).transpose(0, 2, 1, 3)
    K = (k3 @ wk).reshape(bs, -1, N_HEADS, D_QK).transpose(0, 2, 1, 3)
    V = (v3 @ wq).reshape(bs, -1, N_HEADS, D_V).transpose(0, 2, 1, 3)   # W_Q reused, as in PyTorch
    s = jnp.matmul(Q, jnp.swapaxes(K, -1, -2)) / math.sqrt(D_QK)
    p = jax.nn.softmax(s, axis=-1)
    o = jnp.matmul(p, V).transpose(0, 2, 1, 3).reshape(bs, -1, N_HEADS * D_V)
    return o @ fc


def _ln_ref(x, g, b):
    mu = x.mean(-1, keepdims=True)
    var = ((x - mu) ** 2).mean(-1, keepdims=True)
    return (x - mu) / jnp.sqrt(var + LN_EPS) * g[0] + b[0]


def _block_ref(p, x2, enc2, hn, inp):
    x = x2[:, None, :]
    enc = enc2[:, None, :]
    res = x
    xc = jnp.einsum('bld,de->ble', x, p['c1'])
    x_ctx = _mha_ref(hn, xc, xc, p['wq1'], p['wk1'], p['fc1'])
    x = _ln_ref(x_ctx + res, p['g1'], p['be1'])
    res = x
    xc = jnp.einsum('bld,de->ble', x, p['c2'])
    xg = _mha_ref(xc, inp, inp, p['wq2'], p['wk2'], p['fc2'])
    x = _ln_ref(xg + res, p['g2'], p['be2'])
    res = x
    h = _mha_ref(enc, x, x, p['wq3'], p['wk3'], p['fc3'])
    x = _ln_ref(h + res, p['g3'], p['be3'])
    res = x
    y = jax.nn.gelu(x @ p['w1'] + p['b1'][0], approximate=False) @ p['w2'] + p['b2'][0]
    y = _ln_ref(y + res, p['g4'], p['be4'])
    return y, h


def ref_forward(p, inp, enc_out, h0):
    x_cat = jnp.concatenate([h0, inp], axis=1)
    e_cat = jnp.concatenate([h0, enc_out], axis=1)
    hn = h0
    ys = []
    for i in range(x_cat.shape[1]):
        y, hn = _block_ref(p, x_cat[:, i, :], e_cat[:, i, :], hn, inp)
        ys.append(y)
    out = jnp.concatenate(ys, axis=1)[:, 1:, :]
    return out, hn


# ---------------------------------- main -------------------------------------
if __name__ == "__main__":
    key = jax.random.PRNGKey(0)
    kp, ki, ke, kh = jax.random.split(key, 4)
    params = init_params(kp)
    inp = jax.random.normal(ki, (BS, S, D_MODEL), jnp.float32)
    enc = jax.random.normal(ke, (BS, S, D_MODEL), jnp.float32)
    h0 = jax.random.normal(kh, (BS, 1, D_MODEL), jnp.float32)

    out, hn = tldecoder_forward(params, inp, enc, h0)
    out = jax.block_until_ready(out)
    hn = jax.block_until_ready(hn)

    assert out.shape == (BS, S, D_MODEL), out.shape
    assert hn.shape == (BS, 1, D_MODEL), hn.shape

    ref_out, ref_hn = ref_forward(params, inp, enc, h0)
    np.testing.assert_allclose(np.asarray(out), np.asarray(ref_out), atol=5e-2, rtol=5e-2)
    np.testing.assert_allclose(np.asarray(hn), np.asarray(ref_hn), atol=5e-2, rtol=5e-2)

    print("KERNEL_OK")
</pallas_src>

<mosaic_0001>
module attributes {stable_mosaic.version = 11 : i64} {
  func.func @kernel(%arg0: i32, %arg1: memref<18x32xf32, #tpu.memory_space<vmem>>, %arg2: memref<32x320xf32, #tpu.memory_space<vmem>>, %arg3: memref<64x32xf32, #tpu.memory_space<vmem>>, %arg4: memref<18x18xf32, #tpu.memory_space<vmem>>, %arg5: memref<18x32xf32, #tpu.memory_space<vmem>>, %arg6: memref<2x32xf32, #tpu.memory_space<vmem>>) attributes {dimension_semantics = [#tpu.dimension_semantics<arbitrary>], iteration_bounds = array<i64: 1>, scalar_prefetch = 0 : i64, scratch_operands = 0 : i64, tpu.core_type = #tpu.core_type<tc>, window_params = [{pipeline_mode = #tpu.pipeline_mode<synchronous>, transform_indices = @transform_0, window_bounds = array<i64: 18, 32>}, {pipeline_mode = #tpu.pipeline_mode<synchronous>, transform_indices = @transform_1, window_bounds = array<i64: 32, 320>}, {pipeline_mode = #tpu.pipeline_mode<synchronous>, transform_indices = @transform_2, window_bounds = array<i64: 64, 32>}, {pipeline_mode = #tpu.pipeline_mode<synchronous>, transform_indices = @transform_3, window_bounds = array<i64: 18, 18>}, {pipeline_mode = #tpu.pipeline_mode<synchronous>, transform_indices = @transform_4, window_bounds = array<i64: 18, 32>}, {pipeline_mode = #tpu.pipeline_mode<synchronous>, transform_indices = @transform_5, window_bounds = array<i64: 2, 32>}]} {
    %c0 = arith.constant 0 : index
    %c0_0 = arith.constant 0 : index
    %0 = vector.load %arg1[%c0, %c0_0] : memref<18x32xf32, #tpu.memory_space<vmem>>, vector<18x32xf32>
    %c0_1 = arith.constant 0 : index
    %c0_2 = arith.constant 0 : index
    %1 = vector.load %arg2[%c0_1, %c0_2] : memref<32x320xf32, #tpu.memory_space<vmem>>, vector<32x320xf32>
    %2 = vector.extract_strided_slice %1 {offsets = [0, 0], sizes = [32, 32], strides = [1, 1]} : vector<32x320xf32> to vector<32x32xf32>
    %3 = vector.extract_strided_slice %1 {offsets = [0, 32], sizes = [32, 32], strides = [1, 1]} : vector<32x320xf32> to vector<32x32xf32>
    %4 = vector.extract_strided_slice %1 {offsets = [0, 64], sizes = [32, 64], strides = [1, 1]} : vector<32x320xf32> to vector<32x64xf32>
    %5 = vector.extract_strided_slice %1 {offsets = [0, 128], sizes = [32, 32], strides = [1, 1]} : vector<32x320xf32> to vector<32x32xf32>
    %6 = vector.extract_strided_slice %1 {offsets = [0, 160], sizes = [32, 32], strides = [1, 1]} : vector<32x320xf32> to vector<32x32xf32>
    %7 = vector.extract_strided_slice %1 {offsets = [0, 192], sizes = [32, 64], strides = [1, 1]} : vector<32x320xf32> to vector<32x64xf32>
    %8 = vector.extract_strided_slice %1 {offsets = [0, 256], sizes = [32, 64], strides = [1, 1]} : vector<32x320xf32> to vector<32x64xf32>
    %9 = vector.extract_strided_slice %8 {offsets = [0, 0], sizes = [1, 32], strides = [1, 1]} : vector<32x64xf32> to vector<1x32xf32>
    %10 = vector.extract_strided_slice %8 {offsets = [1, 0], sizes = [1, 32], strides = [1, 1]} : vector<32x64xf32> to vector<1x32xf32>
    %11 = vector.extract_strided_slice %8 {offsets = [2, 0], sizes = [1, 32], strides = [1, 1]} : vector<32x64xf32> to vector<1x32xf32>
    %12 = vector.extract_strided_slice %8 {offsets = [3, 0], sizes = [1, 32], strides = [1, 1]} : vector<32x64xf32> to vector<1x32xf32>
    %13 = vector.extract_strided_slice %8 {offsets = [4, 0], sizes = [1, 32], strides = [1, 1]} : vector<32x64xf32> to vector<1x32xf32>
    %14 = vector.extract_strided_slice %8 {offsets = [5, 0], sizes = [1, 32], strides = [1, 1]} : vector<32x64xf32> to vector<1x32xf32>
    %15 = vector.extract_strided_slice %8 {offsets = [6, 0], sizes = [1, 32], strides = [1, 1]} : vector<32x64xf32> to vector<1x32xf32>
    %16 = vector.extract_strided_slice %8 {offsets = [7, 0], sizes = [1, 32], strides = [1, 1]} : vector<32x64xf32> to vector<1x32xf32>
    %17 = vector.extract_strided_slice %8 {offsets = [8, 0], sizes = [1, 64], strides = [1, 1]} : vector<32x64xf32> to vector<1x64xf32>
    %18 = vector.extract_strided_slice %8 {offsets = [9, 0], sizes = [1, 32], strides = [1, 1]} : vector<32x64xf32> to vector<1x32xf32>
    %c0_3 = arith.constant 0 : index
    %c0_4 = arith.constant 0 : index
    %19 = vector.load %arg4[%c0_3, %c0_4] : memref<18x18xf32, #tpu.memory_space<vmem>>, vector<18x18xf32>
    %cst = arith.constant dense<0.000000e+00> : vector<18x32xf32>
    %20 = tpu.matmul %0, %2, %cst {dimension_numbers = #tpu.dot_dimension_numbers<[1], [0], [0], [1], [0, 0, 1, 1], [], []>} : vector<18x32xf32>, vector<32x32xf32>, vector<18x32xf32> -> vector<18x32xf32>
    %21 = arith.addf %20, %0 : vector<18x32xf32>
    %cst_5 = arith.constant dense<0.000000e+00> : vector<18xf32>
    %22 = vector.multi_reduction <add>, %21, %cst_5 [1] : vector<18x32xf32> to vector<18xf32>
    %23 = vector.shape_cast %22 : vector<18xf32> to vector<18x1xf32>
    %cst_6 = arith.constant 3.200000e+01 : f32
    %24 = vector.broadcast %cst_6 : f32 to vector<18x1xf32>
    %25 = arith.divf %23, %24 : vector<18x1xf32>
    %26 = vector.broadcast %25 : vector<18x1xf32> to vector<18x32xf32>
    %27 = arith.subf %21, %26 : vector<18x32xf32>
    %28 = arith.mulf %27, %27 : vector<18x32xf32>
    %cst_7 = arith.constant dense<0.000000e+00> : vector<18xf32>
    %29 = vector.multi_reduction <add>, %28, %cst_7 [1] : vector<18x32xf32> to vector<18xf32>
    %30 = vector.shape_cast %29 : vector<18xf32> to vector<18x1xf32>
    %cst_8 = arith.constant 3.200000e+01 : f32
    %31 = vector.broadcast %cst_8 : f32 to vector<18x1xf32>
    %32 = arith.divf %30, %31 : vector<18x1xf32>
    %cst_9 = arith.constant 9.99999974E-6 : f32
    %33 = vector.broadcast %cst_9 : f32 to vector<18x1xf32>
    %34 = arith.addf %32, %33 : vector<18x1xf32>
    %35 = math.rsqrt %34 : vector<18x1xf32>
    %36 = vector.broadcast %35 : vector<18x1xf32> to vector<18x32xf32>
    %37 = arith.mulf %27, %36 : vector<18x32xf32>
    %38 = vector.broadcast %9 : vector<1x32xf32> to vector<18x32xf32>
    %39 = arith.mulf %37, %38 : vector<18x32xf32>
    %40 = vector.broadcast %10 : vector<1x32xf32> to vector<18x32xf32>
    %41 = arith.addf %39, %40 : vector<18x32xf32>
    %cst_10 = arith.constant dense<0.000000e+00> : vector<18x32xf32>
    %42 = tpu.matmul %41, %3, %cst_10 {dimension_numbers = #tpu.dot_dimension_numbers<[1], [0], [0], [1], [0, 0, 1, 1], [], []>} : vector<18x32xf32>, vector<32x32xf32>, vector<18x32xf32> -> vector<18x32xf32>
    %cst_11 = arith.constant dense<0.000000e+00> : vector<18x64xf32>
    %43 = tpu.matmul %0, %4, %cst_11 {dimension_numbers = #tpu.dot_dimension_numbers<[1], [0], [0], [1], [0, 0, 1, 1], [], []>} : vector<18x32xf32>, vector<32x64xf32>, vector<18x64xf32> -> vector<18x64xf32>
    %44 = vector.extract_strided_slice %43 {offsets = [0, 0], sizes = [18, 32], strides = [1, 1]} : vector<18x64xf32> to vector<18x32xf32>
    %45 = vector.extract_strided_slice %43 {offsets = [0, 32], sizes = [18, 32], strides = [1, 1]} : vector<18x64xf32> to vector<18x32xf32>
    %46 = vector.extract_strided_slice %42 {offsets = [0, 0], sizes = [18, 8], strides = [1, 1]} : vector<18x32xf32> to vector<18x8xf32>
    %47 = vector.extract_strided_slice %44 {offsets = [0, 0], sizes = [18, 8], strides = [1, 1]} : vector<18x32xf32> to vector<18x8xf32>
    %48 = vector.extract_strided_slice %45 {offsets = [0, 0], sizes = [18, 8], strides = [1, 1]} : vector<18x32xf32> to vector<18x8xf32>
    %cst_12 = arith.constant dense<0.000000e+00> : vector<18x18xf32>
    %49 = tpu.matmul %46, %47, %cst_12 {dimension_numbers = #tpu.dot_dimension_numbers<[1], [1], [0], [0], [0, 0, 1, 0], [], []>} : vector<18x8xf32>, vector<18x8xf32>, vector<18x18xf32> -> vector<18x18xf32>
    %50 = arith.addf %49, %19 : vector<18x18xf32>
    %cst_13 = arith.constant dense<0xFF800000> : vector<18xf32>
    %51 = vector.multi_reduction <maximumf>, %50, %cst_13 [1] : vector<18x18xf32> to vector<18xf32>
    %52 = vector.shape_cast %51 : vector<18xf32> to vector<18x1xf32>
    %53 = vector.broadcast %52 : vector<18x1xf32> to vector<18x18xf32>
    %54 = arith.subf %50, %53 : vector<18x18xf32>
    %55 = math.exp %54 : vector<18x18xf32>
    %cst_14 = arith.constant dense<0.000000e+00> : vector<18xf32>
    %56 = vector.multi_reduction <add>, %55, %cst_14 [1] : vector<18x18xf32> to vector<18xf32>
    %57 = vector.shape_cast %56 : vector<18xf32> to vector<18x1xf32>
    %58 = tpu.reciprocal %57 {approx = true} : vector<18x1xf32> -> vector<18x1xf32>
    %59 = vector.broadcast %58 : vector<18x1xf32> to vector<18x18xf32>
    %60 = arith.mulf %55, %59 : vector<18x18xf32>
    %cst_15 = arith.constant dense<0.000000e+00> : vector<18x8xf32>
    %61 = tpu.matmul %60, %48, %cst_15 {dimension_numbers = #tpu.dot_dimension_numbers<[1], [0], [0], [1], [0, 0, 1, 1], [], []>} : vector<18x18xf32>, vector<18x8xf32>, vector<18x8xf32> -> vector<18x8xf32>
    %62 = vector.extract_strided_slice %42 {offsets = [0, 8], sizes = [18, 8], strides = [1, 1]} : vector<18x32xf32> to vector<18x8xf32>
    %63 = vector.extract_strided_slice %44 {offsets = [0, 8], sizes = [18, 8], strides = [1, 1]} : vector<18x32xf32> to vector<18x8xf32>
    %64 = vector.extract_strided_slice %45 {offsets = [0, 8], sizes = [18, 8], strides = [1, 1]} : vector<18x32xf32> to vector<18x8xf32>
    %cst_16 = arith.constant dense<0.000000e+00> : vector<18x18xf32>
    %65 = tpu.matmul %62, %63, %cst_16 {dimension_numbers = #tpu.dot_dimension_numbers<[1], [1], [0], [0], [0, 0, 1, 0], [], []>} : vector<18x8xf32>, vector<18x8xf32>, vector<18x18xf32> -> vector<18x18xf32>
    %66 = arith.addf %65, %19 : vector<18x18xf32>
    %cst_17 = arith.constant dense<0xFF800000> : vector<18xf32>
    %67 = vector.multi_reduction <maximumf>, %66, %cst_17 [1] : vector<18x18xf32> to vector<18xf32>
    %68 = vector.shape_cast %67 : vector<18xf32> to vector<18x1xf32>
    %69 = vector.broadcast %68 : vector<18x1xf32> to vector<18x18xf32>
    %70 = arith.subf %66, %69 : vector<18x18xf32>
    %71 = math.exp %70 : vector<18x18xf32>
    %cst_18 = arith.constant dense<0.000000e+00> : vector<18xf32>
    %72 = vector.multi_reduction <add>, %71, %cst_18 [1] : vector<18x18xf32> to vector<18xf32>
    %73 = vector.shape_cast %72 : vector<18xf32> to vector<18x1xf32>
    %74 = tpu.reciprocal %73 {approx = true} : vector<18x1xf32> -> vector<18x1xf32>
    %75 = vector.broadcast %74 : vector<18x1xf32> to vector<18x18xf32>
    %76 = arith.mulf %71, %75 : vector<18x18xf32>
    %cst_19 = arith.constant dense<0.000000e+00> : vector<18x8xf32>
    %77 = tpu.matmul %76, %64, %cst_19 {dimension_numbers = #tpu.dot_dimension_numbers<[1], [0], [0], [1], [0, 0, 1, 1], [], []>} : vector<18x18xf32>, vector<18x8xf32>, vector<18x8xf32> -> vector<18x8xf32>
    %78 = vector.extract_strided_slice %42 {offsets = [0, 16], sizes = [18, 8], strides = [1, 1]} : vector<18x32xf32> to vector<18x8xf32>
    %79 = vector.extract_strided_slice %44 {offsets = [0, 16], sizes = [18, 8], strides = [1, 1]} : vector<18x32xf32> to vector<18x8xf32>
    %80 = vector.extract_strided_slice %45 {offsets = [0, 16], sizes = [18, 8], strides = [1, 1]} : vector<18x32xf32> to vector<18x8xf32>
    %cst_20 = arith.constant dense<0.000000e+00> : vector<18x18xf32>
    %81 = tpu.matmul %78, %79, %cst_20 {dimension_numbers = #tpu.dot_dimension_numbers<[1], [1], [0], [0], [0, 0, 1, 0], [], []>} : vector<18x8xf32>, vector<18x8xf32>, vector<18x18xf32> -> vector<18x18xf32>
    %82 = arith.addf %81, %19 : vector<18x18xf32>
    %cst_21 = arith.constant dense<0xFF800000> : vector<18xf32>
    %83 = vector.multi_reduction <maximumf>, %82, %cst_21 [1] : vector<18x18xf32> to vector<18xf32>
    %84 = vector.shape_cast %83 : vector<18xf32> to vector<18x1xf32>
    %85 = vector.broadcast %84 : vector<18x1xf32> to vector<18x18xf32>
    %86 = arith.subf %82, %85 : vector<18x18xf32>
    %87 = math.exp %86 : vector<18x18xf32>
    %cst_22 = arith.constant dense<0.000000e+00> : vector<18xf32>
    %88 = vector.multi_reduction <add>, %87, %cst_22 [1] : vector<18x18xf32> to vector<18xf32>
    %89 = vector.shape_cast %88 : vector<18xf32> to vector<18x1xf32>
    %90 = tpu.reciprocal %89 {approx = true} : vector<18x1xf32> -> vector<18x1xf32>
    %91 = vector.broadcast %90 : vector<18x1xf32> to vector<18x18xf32>
    %92 = arith.mulf %87, %91 : vector<18x18xf32>
    %cst_23 = arith.constant dense<0.000000e+00> : vector<18x8xf32>
    %93 = tpu.matmul %92, %80, %cst_23 {dimension_numbers = #tpu.dot_dimension_numbers<[1], [0], [0], [1], [0, 0, 1, 1], [], []>} : vector<18x18xf32>, vector<18x8xf32>, vector<18x8xf32> -> vector<18x8xf32>
    %94 = vector.extract_strided_slice %42 {offsets = [0, 24], sizes = [18, 8], strides = [1, 1]} : vector<18x32xf32> to vector<18x8xf32>
    %95 = vector.extract_strided_slice %44 {offsets = [0, 24], sizes = [18, 8], strides = [1, 1]} : vector<18x32xf32> to vector<18x8xf32>
    %96 = vector.extract_strided_slice %45 {offsets = [0, 24], sizes = [18, 8], strides = [1, 1]} : vector<18x32xf32> to vector<18x8xf32>
    %cst_24 = arith.constant dense<0.000000e+00> : vector<18x18xf32>
    %97 = tpu.matmul %94, %95, %cst_24 {dimension_numbers = #tpu.dot_dimension_numbers<[1], [1], [0], [0], [0, 0, 1, 0], [], []>} : vector<18x8xf32>, vector<18x8xf32>, vector<18x18xf32> -> vector<18x18xf32>
    %98 = arith.addf %97, %19 : vector<18x18xf32>
    %cst_25 = arith.constant dense<0xFF800000> : vector<18xf32>
    %99 = vector.multi_reduction <maximumf>, %98, %cst_25 [1] : vector<18x18xf32> to vector<18xf32>
    %100 = vector.shape_cast %99 : vector<18xf32> to vector<18x1xf32>
    %101 = vector.broadcast %100 : vector<18x1xf32> to vector<18x18xf32>
    %102 = arith.subf %98, %101 : vector<18x18xf32>
    %103 = math.exp %102 : vector<18x18xf32>
    %cst_26 = arith.constant dense<0.000000e+00> : vector<18xf32>
    %104 = vector.multi_reduction <add>, %103, %cst_26 [1] : vector<18x18xf32> to vector<18xf32>
    %105 = vector.shape_cast %104 : vector<18xf32> to vector<18x1xf32>
    %106 = tpu.reciprocal %105 {approx = true} : vector<18x1xf32> -> vector<18x1xf32>
    %107 = vector.broadcast %106 : vector<18x1xf32> to vector<18x18xf32>
    %108 = arith.mulf %103, %107 : vector<18x18xf32>
    %cst_27 = arith.constant dense<0.000000e+00> : vector<18x8xf32>
    %109 = tpu.matmul %108, %96, %cst_27 {dimension_numbers = #tpu.dot_dimension_numbers<[1], [0], [0], [1], [0, 0, 1, 1], [], []>} : vector<18x18xf32>, vector<18x8xf32>, vector<18x8xf32> -> vector<18x8xf32>
    %110 = tpu.concatenate %61, %77, %93, %109 in 1 : vector<18x8xf32>, vector<18x8xf32>, vector<18x8xf32>, vector<18x8xf32> -> vector<18x32xf32>
    %cst_28 = arith.constant dense<0.000000e+00> : vector<18x32xf32>
    %111 = tpu.matmul %110, %5, %cst_28 {dimension_numbers = #tpu.dot_dimension_numbers<[1], [0], [0], [1], [0, 0, 1, 1], [], []>} : vector<18x32xf32>, vector<32x32xf32>, vector<18x32xf32> -> vector<18x32xf32>
    %112 = arith.addf %111, %41 : vector<18x32xf32>
    %cst_29 = arith.constant dense<0.000000e+00> : vector<18xf32>
    %113 = vector.multi_reduction <add>, %112, %cst_29 [1] : vector<18x32xf32> to vector<18xf32>
    %114 = vector.shape_cast %113 : vector<18xf32> to vector<18x1xf32>
    %cst_30 = arith.constant 3.200000e+01 : f32
    %115 = vector.broadcast %cst_30 : f32 to vector<18x1xf32>
    %116 = arith.divf %114, %115 : vector<18x1xf32>
    %117 = vector.broadcast %116 : vector<18x1xf32> to vector<18x32xf32>
    %118 = arith.subf %112, %117 : vector<18x32xf32>
    %119 = arith.mulf %118, %118 : vector<18x32xf32>
    %cst_31 = arith.constant dense<0.000000e+00> : vector<18xf32>
    %120 = vector.multi_reduction <add>, %119, %cst_31 [1] : vector<18x32xf32> to vector<18xf32>
    %121 = vector.shape_cast %120 : vector<18xf32> to vector<18x1xf32>
    %cst_32 = arith.constant 3.200000e+01 : f32
    %122 = vector.broadcast %cst_32 : f32 to vector<18x1xf32>
    %123 = arith.divf %121, %122 : vector<18x1xf32>
    %cst_33 = arith.constant 9.99999974E-6 : f32
    %124 = vector.broadcast %cst_33 : f32 to vector<18x1xf32>
    %125 = arith.addf %123, %124 : vector<18x1xf32>
    %126 = math.rsqrt %125 : vector<18x1xf32>
    %127 = vector.broadcast %126 : vector<18x1xf32> to vector<18x32xf32>
    %128 = arith.mulf %118, %127 : vector<18x32xf32>
    %129 = vector.broadcast %11 : vector<1x32xf32> to vector<18x32xf32>
    %130 = arith.mulf %128, %129 : vector<18x32xf32>
    %131 = vector.broadcast %12 : vector<1x32xf32> to vector<18x32xf32>
    %132 = arith.addf %130, %131 : vector<18x32xf32>
    %cst_34 = arith.constant dense<0.000000e+00> : vector<18x32xf32>
    %133 = tpu.matmul %132, %6, %cst_34 {dimension_numbers = #tpu.dot_dimension_numbers<[1], [0], [0], [1], [0, 0, 1, 1], [], []>} : vector<18x32xf32>, vector<32x32xf32>, vector<18x32xf32> -> vector<18x32xf32>
    %134 = arith.addf %133, %132 : vector<18x32xf32>
    %cst_35 = arith.constant dense<0.000000e+00> : vector<18xf32>
    %135 = vector.multi_reduction <add>, %134, %cst_35 [1] : vector<18x32xf32> to vector<18xf32>
    %136 = vector.shape_cast %135 : vector<18xf32> to vector<18x1xf32>
    %cst_36 = arith.constant 3.200000e+01 : f32
    %137 = vector.broadcast %cst_36 : f32 to vector<18x1xf32>
    %138 = arith.divf %136, %137 : vector<18x1xf32>
    %139 = vector.broadcast %138 : vector<18x1xf32> to vector<18x32xf32>
    %140 = arith.subf %134, %139 : vector<18x32xf32>
    %141 = arith.mulf %140, %140 : vector<18x32xf32>
    %cst_37 = arith.constant dense<0.000000e+00> : vector<18xf32>
    %142 = vector.multi_reduction <add>, %141, %cst_37 [1] : vector<18x32xf32> to vector<18xf32>
    %143 = vector.shape_cast %142 : vector<18xf32> to vector<18x1xf32>
    %cst_38 = arith.constant 3.200000e+01 : f32
    %144 = vector.broadcast %cst_38 : f32 to vector<18x1xf32>
    %145 = arith.divf %143, %144 : vector<18x1xf32>
    %cst_39 = arith.constant 9.99999974E-6 : f32
    %146 = vector.broadcast %cst_39 : f32 to vector<18x1xf32>
    %147 = arith.addf %145, %146 : vector<18x1xf32>
    %148 = math.rsqrt %147 : vector<18x1xf32>
    %149 = vector.broadcast %148 : vector<18x1xf32> to vector<18x32xf32>
    %150 = arith.mulf %140, %149 : vector<18x32xf32>
    %151 = vector.broadcast %13 : vector<1x32xf32> to vector<18x32xf32>
    %152 = arith.mulf %150, %151 : vector<18x32xf32>
    %153 = vector.broadcast %14 : vector<1x32xf32> to vector<18x32xf32>
    %154 = arith.addf %152, %153 : vector<18x32xf32>
    %cst_40 = arith.constant dense<0.000000e+00> : vector<18x64xf32>
    %155 = tpu.matmul %154, %7, %cst_40 {dimension_numbers = #tpu.dot_dimension_numbers<[1], [0], [0], [1], [0, 0, 1, 1], [], []>} : vector<18x32xf32>, vector<32x64xf32>, vector<18x64xf32> -> vector<18x64xf32>
    %156 = vector.broadcast %17 : vector<1x64xf32> to vector<18x64xf32>
    %157 = arith.addf %155, %156 : vector<18x64xf32>
    %cst_41 = arith.constant 5.000000e-01 : f32
    %158 = vector.broadcast %cst_41 : f32 to vector<18x64xf32>
    %159 = arith.mulf %158, %157 : vector<18x64xf32>
    %cst_42 = arith.constant 0.707106769 : f32
    %160 = vector.broadcast %cst_42 : f32 to vector<18x64xf32>
    %161 = arith.mulf %157, %160 : vector<18x64xf32>
    %cst_43 = arith.constant 0.000000e+00 : f32
    %162 = vector.broadcast %cst_43 : f32 to vector<18x64xf32>
    %163 = arith.cmpf oge, %161, %162 : vector<18x64xf32>
    %cst_44 = arith.constant 1.000000e+00 : f32
    %cst_45 = arith.constant -1.000000e+00 : f32
    %164 = vector.broadcast %cst_44 : f32 to vector<18x64xf32>
    %165 = vector.broadcast %cst_45 : f32 to vector<18x64xf32>
    %166 = arith.select %163, %164, %165 : vector<18x64xi1>, vector<18x64xf32>
    %167 = math.absf %161 : vector<18x64xf32>
    %cst_46 = arith.constant 0.327591091 : f32
    %168 = vector.broadcast %cst_46 : f32 to vector<18x64xf32>
    %169 = arith.mulf %168, %167 : vector<18x64xf32>
    %cst_47 = arith.constant 1.000000e+00 : f32
    %170 = vector.broadcast %cst_47 : f32 to vector<18x64xf32>
    %171 = arith.addf %170, %169 : vector<18x64xf32>
    %cst_48 = arith.constant 1.000000e+00 : f32
    %172 = vector.broadcast %cst_48 : f32 to vector<18x64xf32>
    %173 = arith.divf %172, %171 : vector<18x64xf32>
    %cst_49 = arith.constant 1.06140542 : f32
    %174 = vector.broadcast %cst_49 : f32 to vector<18x64xf32>
    %175 = arith.mulf %174, %173 : vector<18x64xf32>
    %cst_50 = arith.constant -1.45315206 : f32
    %176 = vector.broadcast %cst_50 : f32 to vector<18x64xf32>
    %177 = arith.addf %175, %176 : vector<18x64xf32>
    %178 = arith.mulf %177, %173 : vector<18x64xf32>
    %cst_51 = arith.constant 1.42141378 : f32
    %179 = vector.broadcast %cst_51 : f32 to vector<18x64xf32>
    %180 = arith.addf %178, %179 : vector<18x64xf32>
    %181 = arith.mulf %180, %173 : vector<18x64xf32>
    %cst_52 = arith.constant -0.284496725 : f32
    %182 = vector.broadcast %cst_52 : f32 to vector<18x64xf32>
    %183 = arith.addf %181, %182 : vector<18x64xf32>
    %184 = arith.mulf %183, %173 : vector<18x64xf32>
    %cst_53 = arith.constant 0.254829586 : f32
    %185 = vector.broadcast %cst_53 : f32 to vector<18x64xf32>
    %186 = arith.addf %184, %185 : vector<18x64xf32>
    %187 = arith.mulf %186, %173 : vector<18x64xf32>
    %cst_54 = arith.constant 0.000000e+00 : f32
    %188 = vector.broadcast %cst_54 : f32 to vector<18x64xf32>
    %189 = arith.subf %188, %167 : vector<18x64xf32>
    %190 = arith.mulf %189, %167 : vector<18x64xf32>
    %191 = math.exp %190 : vector<18x64xf32>
    %192 = arith.mulf %187, %191 : vector<18x64xf32>
    %cst_55 = arith.constant 1.000000e+00 : f32
    %193 = vector.broadcast %cst_55 : f32 to vector<18x64xf32>
    %194 = arith.subf %193, %192 : vector<18x64xf32>
    %195 = arith.mulf %166, %194 : vector<18x64xf32>
    %cst_56 = arith.constant 1.000000e+00 : f32
    %196 = vector.broadcast %cst_56 : f32 to vector<18x64xf32>
    %197 = arith.addf %196, %195 : vector<18x64xf32>
    %198 = arith.mulf %159, %197 : vector<18x64xf32>
    %c0_57 = arith.constant 0 : index
    %c0_58 = arith.constant 0 : index
    %199 = vector.load %arg3[%c0_57, %c0_58] : memref<64x32xf32, #tpu.memory_space<vmem>>, vector<64x32xf32>
    %cst_59 = arith.constant dense<0.000000e+00> : vector<18x32xf32>
    %200 = tpu.matmul %198, %199, %cst_59 {dimension_numbers = #tpu.dot_dimension_numbers<[1], [0], [0], [1], [0, 0, 1, 1], [], []>} : vector<18x64xf32>, vector<64x32xf32>, vector<18x32xf32> -> vector<18x32xf32>
    %201 = vector.broadcast %18 : vector<1x32xf32> to vector<18x32xf32>
    %202 = arith.addf %200, %201 : vector<18x32xf32>
    %203 = arith.addf %202, %154 : vector<18x32xf32>
    %cst_60 = arith.constant dense<0.000000e+00> : vector<18xf32>
    %204 = vector.multi_reduction <add>, %203, %cst_60 [1] : vector<18x32xf32> to vector<18xf32>
    %205 = vector.shape_cast %204 : vector<18xf32> to vector<18x1xf32>
    %cst_61 = arith.constant 3.200000e+01 : f32
    %206 = vector.broadcast %cst_61 : f32 to vector<18x1xf32>
    %207 = arith.divf %205, %206 : vector<18x1xf32>
    %208 = vector.broadcast %207 : vector<18x1xf32> to vector<18x32xf32>
    %209 = arith.subf %203, %208 : vector<18x32xf32>
    %210 = arith.mulf %209, %209 : vector<18x32xf32>
    %cst_62 = arith.constant dense<0.000000e+00> : vector<18xf32>
    %211 = vector.multi_reduction <add>, %210, %cst_62 [1] : vector<18x32xf32> to vector<18xf32>
    %212 = vector.shape_cast %211 : vector<18xf32> to vector<18x1xf32>
    %cst_63 = arith.constant 3.200000e+01 : f32
    %213 = vector.broadcast %cst_63 : f32 to vector<18x1xf32>
    %214 = arith.divf %212, %213 : vector<18x1xf32>
    %cst_64 = arith.constant 9.99999974E-6 : f32
    %215 = vector.broadcast %cst_64 : f32 to vector<18x1xf32>
    %216 = arith.addf %214, %215 : vector<18x1xf32>
    %217 = math.rsqrt %216 : vector<18x1xf32>
    %218 = vector.broadcast %217 : vector<18x1xf32> to vector<18x32xf32>
    %219 = arith.mulf %209, %218 : vector<18x32xf32>
    %220 = vector.broadcast %15 : vector<1x32xf32> to vector<18x32xf32>
    %221 = arith.mulf %219, %220 : vector<18x32xf32>
    %222 = vector.broadcast %16 : vector<1x32xf32> to vector<18x32xf32>
    %223 = arith.addf %221, %222 : vector<18x32xf32>
    %c0_65 = arith.constant 0 : index
    %c0_66 = arith.constant 0 : index
    %224 = vector.load %arg5[%c0_65, %c0_66] : memref<18x32xf32, #tpu.memory_space<vmem>>, vector<18x32xf32>
    tpu.vector_store %arg5[%c0_65, %c0_66], %223 {strides = array<i32>} : memref<18x32xf32, #tpu.memory_space<vmem>>, vector<18x32xf32>,
    %225 = vector.extract_strided_slice %133 {offsets = [8, 0], sizes = [1, 32], strides = [1, 1]} : vector<18x32xf32> to vector<1x32xf32>
    %226 = vector.extract_strided_slice %133 {offsets = [17, 0], sizes = [1, 32], strides = [1, 1]} : vector<18x32xf32> to vector<1x32xf32>
    %227 = tpu.concatenate %225, %226 in 0 : vector<1x32xf32>, vector<1x32xf32> -> vector<2x32xf32>
    %c0_67 = arith.constant 0 : index
    %c0_68 = arith.constant 0 : index
    %228 = vector.load %arg6[%c0_67, %c0_68] : memref<2x32xf32, #tpu.memory_space<vmem>>, vector<2x32xf32>
    tpu.vector_store %arg6[%c0_67, %c0_68], %227 {strides = array<i32>} : memref<2x32xf32, #tpu.memory_space<vmem>>, vector<2x32xf32>,
    return
  }
  func.func @transform_0(%arg0: i32) -> (i32, i32) {
    %c0_i32 = arith.constant 0 : i32
    %c0_i32_0 = arith.constant 0 : i32
    %c0_i32_1 = arith.constant 0 : i32
    return %c0_i32, %c0_i32_0 : i32, i32
  }
  func.func @transform_1(%arg0: i32) -> (i32, i32) {
    %c0_i32 = arith.constant 0 : i32
    %c0_i32_0 = arith.constant 0 : i32
    %c0_i32_1 = arith.constant 0 : i32
    return %c0_i32, %c0_i32_0 : i32, i32
  }
  func.func @transform_2(%arg0: i32) -> (i32, i32) {
    %c0_i32 = arith.constant 0 : i32
    %c0_i32_0 = arith.constant 0 : i32
    %c0_i32_1 = arith.constant 0 : i32
    return %c0_i32, %c0_i32_0 : i32, i32
  }
  func.func @transform_3(%arg0: i32) -> (i32, i32) {
    %c0_i32 = arith.constant 0 : i32
    %c0_i32_0 = arith.constant 0 : i32
    %c0_i32_1 = arith.constant 0 : i32
    return %c0_i32, %c0_i32_0 : i32, i32
  }
  func.func @transform_4(%arg0: i32) -> (i32, i32) {
    %c0_i32 = arith.constant 0 : i32
    %c0_i32_0 = arith.constant 0 : i32
    %c0_i32_1 = arith.constant 0 : i32
    return %c0_i32, %c0_i32_0 : i32, i32
  }
  func.func @transform_5(%arg0: i32) -> (i32, i32) {
    %c0_i32 = arith.constant 0 : i32
    %c0_i32_0 = arith.constant 0 : i32
    %c0_i32_1 = arith.constant 0 : i32
    return %c0_i32, %c0_i32_0 : i32, i32
  }
}

</mosaic_0001>

<llo_original>
// kernel: tpu_custom_call.1
$region0: #{tpu_custom_call.1}
  #allocation0 [shape = 'u32[]', space=smem, size = 0x4, offset = 0x4, fixed_abs, tag = 'smem constant byte address 0x4 - core index']
  #allocation1 [shape = 'u32[144,128]{1,0:T(1,128)}', space=vmem, size = 0x12000, scoped, tag = 'internal scratch']
  %s0 = inlined_call_operand.hbm [shape: f32[18,32], index: 0, kind: input, shape index: {}]
  %s1 = inlined_call_operand.vmem [shape: f32[32,320], index: 1, kind: input, shape index: {}]
  %s2 = inlined_call_operand.vmem [shape: f32[64,32], index: 2, kind: input, shape index: {}]
  %s3 = inlined_call_operand.hbm [shape: f32[18,18], index: 3, kind: input, shape index: {}]
  %s4 = inlined_call_operand.hbm [shape: f32[18,32], index: 4, kind: output, shape index: {0}]
  %s5 = inlined_call_operand.hbm [shape: f32[2,32], index: 5, kind: output, shape index: {1}]
  %6 = xla_tuple %s4, %s5
  %s7 = sld [smem:[#allocation0]]
  $region42: #{tpu_custom_call.1} parent=0
    _
  %s9 = ssub.s32 1, %s7
  %s10 = scalar_select 0, %s9, %s7
  $region1: #{tpu_custom_call.1} parent=0
    #allocation2 [shape = 'u8[12288]{0}', space=vmem, size = 0x3000, scoped, tag = 'input window, operand 0, single buffered']
    #allocation3 [shape = 's32[1]{0}', space=sflag, size = 0x4, scoped, tag = 'scoped memory for tpu_custom_call.1']
    #allocation4 [shape = 's32[1]{0}', space=sflag, size = 0x4, scoped, tag = 'scoped memory for tpu_custom_call.1']
    #allocation5 [shape = 'u8[12288]{0}', space=vmem, size = 0x3000, scoped, tag = 'input window, operand 3, single buffered']
    #allocation6 [shape = 's32[1]{0}', space=sflag, size = 0x4, scoped, tag = 'scoped memory for tpu_custom_call.1']
    #allocation7 [shape = 'u8[12288]{0}', space=vmem, size = 0x3000, scoped, tag = 'output window, operand 0, single buffered']
    #allocation8 [shape = 'u8[1024]{0}', space=vmem, size = 0x400, scoped, tag = 'output window, operand 1, single buffered']
    #allocation9 [shape = 's32[1]{0}', space=sflag, size = 0x4, scoped, tag = 'scoped memory for tpu_custom_call.1']
    %11 = vsyncpa [#allocation3], 0
    %12 = vsyncpa [#allocation6], 0
    %13 = vsyncpa [#allocation4], 0
    %14 = vsyncpa [#allocation9], 0
    // Predicated region
    $region2: #{tpu_custom_call.1} parent=1 // pred_check
      _
    $region3: #{tpu_custom_call.1} parent=1 // pred_check_branch
      %16 = sbr.rel (0) target = $region5
    $region4: #{tpu_custom_call.1} parent=1 // pred_region
      %s18 = ssub.s32 384, 384
      %19 = vsyncadd [#allocation3], %s18
      %s20 = sshll.u32 [#allocation2], 4
      %s21 = int_to_ptr.vmem [resolvable:$true] %s20
      %26 = dma.hbm_to_vmem [thread:$0]  %s0, 384, %s21, [#allocation3], 128, 128, 8
    $region5: #{tpu_custom_call.1} parent=1 // pred_fallthru
      _
    // Predicated region
    $region6: #{tpu_custom_call.1} parent=1 // pred_check
      _
    $region7: #{tpu_custom_call.1} parent=1 // pred_check_branch
      %28 = sbr.rel (0) target = $region9
    $region8: #{tpu_custom_call.1} parent=1 // pred_region
      _
    $region9: #{tpu_custom_call.1} parent=1 // pred_fallthru
      _
    // Predicated region
    $region10: #{tpu_custom_call.1} parent=1 // pred_check
      _
    $region11: #{tpu_custom_call.1} parent=1 // pred_check_branch
      %30 = sbr.rel (0) target = $region13
    $region12: #{tpu_custom_call.1} parent=1 // pred_region
      _
    $region13: #{tpu_custom_call.1} parent=1 // pred_fallthru
      _
    // Predicated region
    $region14: #{tpu_custom_call.1} parent=1 // pred_check
      _
    $region15: #{tpu_custom_call.1} parent=1 // pred_check_branch
      %32 = sbr.rel (0) target = $region17
    $region16: #{tpu_custom_call.1} parent=1 // pred_region
      %s34 = ssub.s32 384, 384
      %35 = vsyncadd [#allocation6], %s34
      %s36 = sshll.u32 [#allocation5], 4
      %s37 = int_to_ptr.vmem [resolvable:$true] %s36
      %42 = dma.hbm_to_vmem [thread:$0]  %s3, 384, %s37, [#allocation6], 128, 128, 8
    $region17: #{tpu_custom_call.1} parent=1 // pred_fallthru
      _
    // Predicated region
    $region18: #{tpu_custom_call.1} parent=1 // pred_check
      _
    $region19: #{tpu_custom_call.1} parent=1 // pred_check_branch
      %44 = sbr.rel (0) target = $region21
    $region20: #{tpu_custom_call.1} parent=1 // pred_region
      %45 = dma.done [#allocation3], 384
    $region21: #{tpu_custom_call.1} parent=1 // pred_fallthru
      _
    // Predicated region
    $region22: #{tpu_custom_call.1} parent=1 // pred_check
      _
    $region23: #{tpu_custom_call.1} parent=1 // pred_check_branch
      %47 = sbr.rel (0) target = $region25
    $region24: #{tpu_custom_call.1} parent=1 // pred_region
      %48 = dma.done [#allocation6], 384
    $region25: #{tpu_custom_call.1} parent=1 // pred_fallthru
      _
    %v49 = vld [vmem:[#allocation2] sm:$0xff]
    %v50 = vld [vmem:[#allocation2 + $0x8] sm:$0xff]
    %v51 = vld [vmem:[#allocation2 + $0x10] sm:$0x3]
    %v52 = vld [vmem:[%s1] sm:$0xff]
    %v53 = vld [vmem:[%s1 + $0x8] sm:$0xff]
    %v54 = vld [vmem:[%s1 + $0x10] sm:$0xff]
    %v55 = vld [vmem:[%s1 + $0x18] sm:$0xff]
    %v56 = vld [vmem:[%s1 + $0x20] sm:$0xff]
    %v57 = vld [vmem:[%s1 + $0x28] sm:$0xff]
    %v58 = vld [vmem:[%s1 + $0x30] sm:$0xff]
    %v59 = vld [vmem:[%s1 + $0x38] sm:$0xff]
    %v60 = vld [vmem:[%s1 + $0x48] sm:$0xff]
    %v61 = vld [vmem:[%s1 + $0x50] sm:$0xff]
    %v62 = vld [vmem:[#allocation5] sm:$0xff]
    %v63 = vld [vmem:[#allocation5 + $0x8] sm:$0xff]
    %v64 = vld [vmem:[#allocation5 + $0x10] sm:$0x3]
    %vm65 = vcmask 261120
    %v67 = vsel %vm65, %v49, 0
    %v70 = vsel %vm65, %v50, 0
    %v73 = vsel %vm65, %v51, 0
    %75 = vmatprep.subr.mxu0 0.0
    %76 = vmatpush1.msra.mxu0 %v52
    %77 = vmatprep.subr.mxu0 0.0
    %78 = vmatpush1.msra.mxu0 %v55
    %79 = vmatprep.subr.mxu0 0.0
    %80 = vmatpush1.msra.mxu0 %v58
    %81 = vmatprep.subr.mxu0 0.0
    %82 = vmatpush1.msra.mxu0 %v60
    %83 = vmatprep.subr.mxu0 0.0
    %84 = vmatpush1.msra.mxu0 0.0
    %85 = vmatprep.subr.mxu0 0.0
    %86 = vmatpush1.msra.mxu0 0.0
    %87 = vmatprep.subr.mxu0 0.0
    %88 = vmatpush1.msra.mxu0 0.0
    %89 = vmatprep.subr.mxu0 0.0
    %90 = vmatpush1.msra.mxu0 0.0
    %91 = vmatprep.subr.mxu0 0.0
    %92 = vmatpush1.msra.mxu0 0.0
    %93 = vmatprep.subr.mxu0 0.0
    %94 = vmatpush1.msra.mxu0 0.0
    %95 = vmatprep.subr.mxu0 0.0
    %96 = vmatpush1.msra.mxu0 0.0
    %97 = vmatprep.subr.mxu0 0.0
    %98 = vmatpush1.msra.mxu0 0.0
    %99 = vmatprep.subr.mxu0 0.0
    %100 = vmatpush1.msra.mxu0 0.0
    %101 = vmatprep.subr.mxu0 0.0
    %102 = vmatpush1.msra.mxu0 0.0
    %103 = vmatprep.subr.mxu0 0.0
    %104 = vmatpush1.msra.mxu0 0.0
    %105 = vmatprep.subr.mxu0 0.0
    %106 = vmatpush1.msra.mxu0 0.0
    %107 = vmatprep.subr.mxu0 0.0
    %108 = vmatpush1.msra.mxu0 0.0
    %109 = vmatprep.subr.mxu0 0.0
    %110 = vmatpush1.msra.mxu0 0.0
    %111 = vmatprep.subr.mxu0 0.0
    %112 = vmatpush1.msra.mxu0 0.0
    %113 = vmatprep.subr.mxu0 0.0
    %114 = vmatpush1.msra.mxu0 0.0
    %115 = vmatprep.subr.mxu0 0.0
    %116 = vmatpush1.msra.mxu0 0.0
    %117 = vmatprep.subr.mxu0 0.0
    %118 = vmatpush1.msra.mxu0 0.0
    %119 = vmatprep.subr.mxu0 0.0
    %120 = vmatpush1.msra.mxu0 0.0
    %121 = vmatprep.subr.mxu0 0.0
    %122 = vmatpush1.msra.mxu0 0.0
    %123 = vmatprep.subr.mxu0 0.0
    %124 = vmatpush1.msra.mxu0 0.0
    %125 = vmatprep.subr.mxu0 0.0
    %126 = vmatpush1.msra.mxu0 0.0
    %127 = vmatprep.subr.mxu0 0.0
    %128 = vmatpush1.msra.mxu0 0.0
    %129 = vmatprep.subr.mxu0 0.0
    %130 = vmatpush1.msra.mxu0 0.0
    %131 = vmatprep.subr.mxu0 0.0
    %132 = vmatpush1.msra.mxu0 0.0
    %133 = vmatprep.subr.mxu0 0.0
    %134 = vmatpush1.msra.mxu0 0.0
    %135 = vmatprep.subr.mxu0 0.0
    %136 = vmatpush1.msra.mxu0 0.0
    %137 = vmatprep.subr.mxu0 0.0
    %138 = vmatpush1.msra.mxu0 0.0
    %139 = vmatprep.mubr.f32.mxu0 0.0
    %140 = vmatmul.mubr.f32.gmra.mrb[0].mxu0 %v67
    %v141 = vpop.f32.mrb[0].mxu0
    %v142 = vadd.f32 %v49, %v141
    %v143 = vpop.f32.mrb[0].mxu0
    %144 = vmatprep.mubr.f32.mxu0 0.0
    %145 = vmatmul.mubr.f32.gmra.mrb[0].mxu0 %v70
    %v146 = vpop.f32.mrb[0].mxu0
    %v147 = vadd.f32 %v50, %v146
    %v148 = vpop.f32.mrb[0].mxu0
    %149 = vmatprep.mubr.f32.mxu0 0.0
    %150 = vmatmul.mubr.f32.gmra.mrb[0].mxu0 %v73
    %v151 = vpop.f32.mrb[0].mxu0
    %v152 = vadd.f32 %v51, %v151
    %v153 = vpop.f32.mrb[0].mxu0
    %154 = vdwg.mxu0
    %v155 = vsel %vm65, %v142, 0.0
    %156 = vadd.xlane.f32.xlu0 %v155
    %v157 = vpop.xlane.xlu0 %156
    %v158 = vsel %vm65, %v147, 0.0
    %159 = vadd.xlane.f32.xlu0 %v158
    %v160 = vpop.xlane.xlu0 %159
    %vm161 = vcmask 254976
    %v162 = vsel %vm161, %v152, 0.0
    %163 = vadd.xlane.f32.xlu0 %v162
    %v164 = vpop.xlane.xlu0 %163
    %v165 = vrcp.pop 32.0
    %v166 = vmul.f32 %v157, %v165
    %v167 = vmul.f32 %v160, %v165
    %v168 = vmul.f32 %v164, %v165
    %v169 = vsub.f32 %v142, %v166
    %v170 = vsub.f32 %v147, %v167
    %v171 = vsub.f32 %v152, %v168
    %v172 = vmul.f32 %v169, %v169
    %v173 = vmul.f32 %v170, %v170
    %v174 = vmul.f32 %v171, %v171
    %v175 = vsel %vm65, %v172, 0.0
    %176 = vadd.xlane.f32.xlu0 %v175
    %v177 = vpop.xlane.xlu0 %176
    %v178 = vsel %vm65, %v173, 0.0
    %179 = vadd.xlane.f32.xlu0 %v178
    %v180 = vpop.xlane.xlu0 %179
    %v181 = vsel %vm161, %v174, 0.0
    %182 = vadd.xlane.f32.xlu0 %v181
    %v183 = vpop.xlane.xlu0 %182
    %v184 = vmul.f32 %v177, %v165
    %v185 = vmul.f32 %v180, %v165
    %v186 = vmul.f32 %v183, %v165
    %v187 = vadd.f32 %v184, 1e-05
    %v188 = vadd.f32 %v185, 1e-05
    %v189 = vadd.f32 %v186, 1e-05
    %v190 = vrsqrt.pop %v187
    %v191 = vrsqrt.pop %v188
    %v192 = vrsqrt.pop %v189
    %v193 = vmul.f32 %v169, %v190
    %v194 = vmul.f32 %v170, %v191
    %v195 = vmul.f32 %v171, %v192
    %v196 = vlaneseq
    %v197 = vshrl.u32 %v196, 7
    %v198 = vsub.s32 0, %v197
    %v199 = vrot.slane %v54, %v198
    %v200 = vmul.f32 %v193, %v199
    %v201 = vmul.f32 %v194, %v199
    %v202 = vmul.f32 %v195, %v199
    %v203 = vlaneseq
    %v204 = vshrl.u32 %v203, 7
    %v205 = vsub.s32 1, %v204
    %v206 = vrot.slane %v54, %v205
    %v207 = vadd.f32 %v200, %v206
    %v208 = vadd.f32 %v201, %v206
    %v209 = vadd.f32 %v202, %v206
    %214 = vrot.lane.b32.xlu0 %v52, 96
    %v215 = vpop.permute.xlu0 %214
    %216 = vrot.lane.b32.xlu0 %v55, 96
    %v217 = vpop.permute.xlu0 %216
    %218 = vrot.lane.b32.xlu0 %v58, 96
    %v219 = vpop.permute.xlu0 %218
    %220 = vrot.lane.b32.xlu0 %v60, 96
    %v221 = vpop.permute.xlu0 %220
    %v227 = vsel %vm65, %v207, 0
    %v230 = vsel %vm65, %v208, 0
    %v233 = vsel %vm65, %v209, 0
    %235 = vmatprep.subr.mxu0 0.0
    %236 = vmatpush1.msra.mxu0 %v215
    %237 = vmatprep.subr.mxu0 0.0
    %238 = vmatpush1.msra.mxu0 %v217
    %239 = vmatprep.subr.mxu0 0.0
    %240 = vmatpush1.msra.mxu0 %v219
    %241 = vmatprep.subr.mxu0 0.0
    %242 = vmatpush1.msra.mxu0 %v221
    %243 = vmatprep.subr.mxu0 0.0
    %244 = vmatpush1.msra.mxu0 0.0
    %245 = vmatprep.subr.mxu0 0.0
    %246 = vmatpush1.msra.mxu0 0.0
    %247 = vmatprep.subr.mxu0 0.0
    %248 = vmatpush1.msra.mxu0 0.0
    %249 = vmatprep.subr.mxu0 0.0
    %250 = vmatpush1.msra.mxu0 0.0
    %251 = vmatprep.subr.mxu0 0.0
    %252 = vmatpush1.msra.mxu0 0.0
    %253 = vmatprep.subr.mxu0 0.0
    %254 = vmatpush1.msra.mxu0 0.0
    %255 = vmatprep.subr.mxu0 0.0
    %256 = vmatpush1.msra.mxu0 0.0
    %257 = vmatprep.subr.mxu0 0.0
    %258 = vmatpush1.msra.mxu0 0.0
    %259 = vmatprep.subr.mxu0 0.0
    %260 = vmatpush1.msra.mxu0 0.0
    %261 = vmatprep.subr.mxu0 0.0
    %262 = vmatpush1.msra.mxu0 0.0
    %263 = vmatprep.subr.mxu0 0.0
    %264 = vmatpush1.msra.mxu0 0.0
    %265 = vmatprep.subr.mxu0 0.0
    %266 = vmatpush1.msra.mxu0 0.0
    %267 = vmatprep.subr.mxu0 0.0
    %268 = vmatpush1.msra.mxu0 0.0
    %269 = vmatprep.subr.mxu0 0.0
    %270 = vmatpush1.msra.mxu0 0.0
    %271 = vmatprep.subr.mxu0 0.0
    %272 = vmatpush1.msra.mxu0 0.0
    %273 = vmatprep.subr.mxu0 0.0
    %274 = vmatpush1.msra.mxu0 0.0
    %275 = vmatprep.subr.mxu0 0.0
    %276 = vmatpush1.msra.mxu0 0.0
    %277 = vmatprep.subr.mxu0 0.0
    %278 = vmatpush1.msra.mxu0 0.0
    %279 = vmatprep.subr.mxu0 0.0
    %280 = vmatpush1.msra.mxu0 0.0
    %281 = vmatprep.subr.mxu0 0.0
    %282 = vmatpush1.msra.mxu0 0.0
    %283 = vmatprep.subr.mxu0 0.0
    %284 = vmatpush1.msra.mxu0 0.0
    %285 = vmatprep.subr.mxu0 0.0
    %286 = vmatpush1.msra.mxu0 0.0
    %287 = vmatprep.subr.mxu0 0.0
    %288 = vmatpush1.msra.mxu0 0.0
    %289 = vmatprep.subr.mxu0 0.0
    %290 = vmatpush1.msra.mxu0 0.0
    %291 = vmatprep.subr.mxu0 0.0
    %292 = vmatpush1.msra.mxu0 0.0
    %293 = vmatprep.subr.mxu0 0.0
    %294 = vmatpush1.msra.mxu0 0.0
    %295 = vmatprep.subr.mxu0 0.0
    %296 = vmatpush1.msra.mxu0 0.0
    %297 = vmatprep.subr.mxu0 0.0
    %298 = vmatpush1.msra.mxu0 0.0
    %299 = vmatprep.mubr.f32.mxu0 0.0
    %300 = vmatmul.mubr.f32.gmra.mrb[0].mxu0 %v227
    %v301 = vpop.f32.mrb[0].mxu0
    %v302 = vadd.f32 0.0, %v301
    %v303 = vpop.f32.mrb[0].mxu0
    %304 = vmatprep.mubr.f32.mxu0 0.0
    %305 = vmatmul.mubr.f32.gmra.mrb[0].mxu0 %v230
    %v306 = vpop.f32.mrb[0].mxu0
    %v307 = vadd.f32 0.0, %v306
    %v308 = vpop.f32.mrb[0].mxu0
    %309 = vmatprep.mubr.f32.mxu0 0.0
    %310 = vmatmul.mubr.f32.gmra.mrb[0].mxu0 %v233
    %v311 = vpop.f32.mrb[0].mxu0
    %v312 = vadd.f32 0.0, %v311
    %v313 = vpop.f32.mrb[0].mxu0
    %314 = vdwg.mxu0
    %315 = vrot.lane.b32.xlu0 %v52, 64
    %v316 = vpop.permute.xlu0 %315
    %317 = vrot.lane.b32.xlu0 %v55, 64
    %v318 = vpop.permute.xlu0 %317
    %319 = vrot.lane.b32.xlu0 %v58, 64
    %v320 = vpop.permute.xlu0 %319
    %321 = vrot.lane.b32.xlu0 %v60, 64
    %v322 = vpop.permute.xlu0 %321
    %327 = vmatprep.subr.mxu0 0.0
    %328 = vmatpush1.msra.mxu0 %v316
    %329 = vmatprep.subr.mxu0 0.0
    %330 = vmatpush1.msra.mxu0 %v318
    %331 = vmatprep.subr.mxu0 0.0
    %332 = vmatpush1.msra.mxu0 %v320
    %333 = vmatprep.subr.mxu0 0.0
    %334 = vmatpush1.msra.mxu0 %v322
    %335 = vmatprep.subr.mxu0 0.0
    %336 = vmatpush1.msra.mxu0 0.0
    %337 = vmatprep.subr.mxu0 0.0
    %338 = vmatpush1.msra.mxu0 0.0
    %339 = vmatprep.subr.mxu0 0.0
    %340 = vmatpush1.msra.mxu0 0.0
    %341 = vmatprep.subr.mxu0 0.0
    %342 = vmatpush1.msra.mxu0 0.0
    %343 = vmatprep.subr.mxu0 0.0
    %344 = vmatpush1.msra.mxu0 0.0
    %345 = vmatprep.subr.mxu0 0.0
    %346 = vmatpush1.msra.mxu0 0.0
    %347 = vmatprep.subr.mxu0 0.0
    %348 = vmatpush1.msra.mxu0 0.0
    %349 = vmatprep.subr.mxu0 0.0
    %350 = vmatpush1.msra.mxu0 0.0
    %351 = vmatprep.subr.mxu0 0.0
    %352 = vmatpush1.msra.mxu0 0.0
    %353 = vmatprep.subr.mxu0 0.0
    %354 = vmatpush1.msra.mxu0 0.0
    %355 = vmatprep.subr.mxu0 0.0
    %356 = vmatpush1.msra.mxu0 0.0
    %357 = vmatprep.subr.mxu0 0.0
    %358 = vmatpush1.msra.mxu0 0.0
    %359 = vmatprep.subr.mxu0 0.0
    %360 = vmatpush1.msra.mxu0 0.0
    %361 = vmatprep.subr.mxu0 0.0
    %362 = vmatpush1.msra.mxu0 0.0
    %363 = vmatprep.subr.mxu0 0.0
    %364 = vmatpush1.msra.mxu0 0.0
    %365 = vmatprep.subr.mxu0 0.0
    %366 = vmatpush1.msra.mxu0 0.0
    %367 = vmatprep.subr.mxu0 0.0
    %368 = vmatpush1.msra.mxu0 0.0
    %369 = vmatprep.subr.mxu0 0.0
    %370 = vmatpush1.msra.mxu0 0.0
    %371 = vmatprep.subr.mxu0 0.0
    %372 = vmatpush1.msra.mxu0 0.0
    %373 = vmatprep.subr.mxu0 0.0
    %374 = vmatpush1.msra.mxu0 0.0
    %375 = vmatprep.subr.mxu0 0.0
    %376 = vmatpush1.msra.mxu0 0.0
    %377 = vmatprep.subr.mxu0 0.0
    %378 = vmatpush1.msra.mxu0 0.0
    %379 = vmatprep.subr.mxu0 0.0
    %380 = vmatpush1.msra.mxu0 0.0
    %381 = vmatprep.subr.mxu0 0.0
    %382 = vmatpush1.msra.mxu0 0.0
    %383 = vmatprep.subr.mxu0 0.0
    %384 = vmatpush1.msra.mxu0 0.0
    %385 = vmatprep.subr.mxu0 0.0
    %386 = vmatpush1.msra.mxu0 0.0
    %387 = vmatprep.subr.mxu0 0.0
    %388 = vmatpush1.msra.mxu0 0.0
    %389 = vmatprep.subr.mxu0 0.0
    %390 = vmatpush1.msra.mxu0 0.0
    %391 = vmatprep.mubr.f32.mxu0 0.0
    %392 = vmatmul.mubr.f32.gmra.mrb[0].mxu0 %v67
    %v393 = vpop.f32.mrb[0].mxu0
    %v394 = vadd.f32 0.0, %v393
    %v395 = vpop.f32.mrb[0].mxu0
    %396 = vmatprep.mubr.f32.mxu0 0.0
    %397 = vmatmul.mubr.f32.gmra.mrb[0].mxu0 %v70
    %v398 = vpop.f32.mrb[0].mxu0
    %v399 = vadd.f32 0.0, %v398
    %v400 = vpop.f32.mrb[0].mxu0
    %401 = vmatprep.mubr.f32.mxu0 0.0
    %402 = vmatmul.mubr.f32.gmra.mrb[0].mxu0 %v73
    %v403 = vpop.f32.mrb[0].mxu0
    %v404 = vadd.f32 0.0, %v403
    %v405 = vpop.f32.mrb[0].mxu0
    %406 = vdwg.mxu0
    %vm407 = vcmask 64512
    %v409 = vsel %vm407, %v302, 0
    %v412 = vsel %vm407, %v307, 0
    %v415 = vsel %vm407, %v312, 0
    %v418 = vsel %vm407, %v394, 0
    %v421 = vsel %vm407, %v399, 0
    %v424 = vsel %vm407, %v404, 0
    %426 = vmatprep.subr.mxu0 0.0
    %427 = vmatpush1.xpose.msra.mxu0 %v418
    %428 = vmatprep.subr.mxu0 0.0
    %429 = vmatpush1.xpose.msra.mxu0 %v421
    %430 = vmatprep.subr.mxu0 0.0
    %431 = vmatpush1.xpose.msra.mxu0 %v424
    %432 = vmatprep.subr.mxu0 0.0
    %433 = vmatpush1.xpose.msra.mxu0 0.0
    %434 = vmatprep.subr.mxu0 0.0
    %435 = vmatpush1.xpose.msra.mxu0 0.0
    %436 = vmatprep.subr.mxu0 0.0
    %437 = vmatpush1.xpose.msra.mxu0 0.0
    %438 = vmatprep.subr.mxu0 0.0
    %439 = vmatpush1.xpose.msra.mxu0 0.0
    %440 = vmatprep.subr.mxu0 0.0
    %441 = vmatpush1.xpose.msra.mxu0 0.0
    %442 = vmatprep.subr.mxu0 0.0
    %443 = vmatpush1.xpose.msra.mxu0 0.0
    %444 = vmatprep.subr.mxu0 0.0
    %445 = vmatpush1.xpose.msra.mxu0 0.0
    %446 = vmatprep.subr.mxu0 0.0
    %447 = vmatpush1.xpose.msra.mxu0 0.0
    %448 = vmatprep.subr.mxu0 0.0
    %449 = vmatpush1.xpose.msra.mxu0 0.0
    %450 = vmatprep.subr.mxu0 0.0
    %451 = vmatpush1.xpose.msra.mxu0 0.0
    %452 = vmatprep.subr.mxu0 0.0
    %453 = vmatpush1.xpose.msra.mxu0 0.0
    %454 = vmatprep.subr.mxu0 0.0
    %455 = vmatpush1.xpose.msra.mxu0 0.0
    %456 = vmatprep.subr.mxu0 0.0
    %457 = vmatpush1.xpose.msra.mxu0 0.0
    %458 = vmatprep.subr.mxu0 0.0
    %459 = vmatpush1.xpose.msra.mxu0 0.0
    %460 = vmatprep.subr.mxu0 0.0
    %461 = vmatpush1.xpose.msra.mxu0 0.0
    %462 = vmatprep.subr.mxu0 0.0
    %463 = vmatpush1.xpose.msra.mxu0 0.0
    %464 = vmatprep.subr.mxu0 0.0
    %465 = vmatpush1.xpose.msra.mxu0 0.0
    %466 = vmatprep.subr.mxu0 0.0
    %467 = vmatpush1.xpose.msra.mxu0 0.0
    %468 = vmatprep.subr.mxu0 0.0
    %469 = vmatpush1.xpose.msra.mxu0 0.0
    %470 = vmatprep.subr.mxu0 0.0
    %471 = vmatpush1.xpose.msra.mxu0 0.0
    %472 = vmatprep.subr.mxu0 0.0
    %473 = vmatpush1.xpose.msra.mxu0 0.0
    %474 = vmatprep.subr.mxu0 0.0
    %475 = vmatpush1.xpose.msra.mxu0 0.0
    %476 = vmatprep.subr.mxu0 0.0
    %477 = vmatpush1.xpose.msra.mxu0 0.0
    %478 = vmatprep.subr.mxu0 0.0
    %479 = vmatpush1.xpose.msra.mxu0 0.0
    %480 = vmatprep.subr.mxu0 0.0
    %481 = vmatpush1.xpose.msra.mxu0 0.0
    %482 = vmatprep.subr.mxu0 0.0
    %483 = vmatpush1.xpose.msra.mxu0 0.0
    %484 = vmatprep.subr.mxu0 0.0
    %485 = vmatpush1.xpose.msra.mxu0 0.0
    %486 = vmatprep.subr.mxu0 0.0
    %487 = vmatpush1.xpose.msra.mxu0 0.0
    %488 = vmatprep.subr.mxu0 0.0
    %489 = vmatpush1.xpose.msra.mxu0 0.0
    %490 = vmatprep.mubr.f32.mxu0 0.0
    %491 = vmatmul.mubr.f32.gmra.mrb[0].mxu0 %v409
    %v492 = vpop.f32.mrb[0].mxu0
    %v493 = vadd.f32 %v62, %v492
    %v494 = vpop.f32.mrb[0].mxu0
    %495 = vmatprep.mubr.f32.mxu0 0.0
    %496 = vmatmul.mubr.f32.gmra.mrb[0].mxu0 %v412
    %v497 = vpop.f32.mrb[0].mxu0
    %v498 = vadd.f32 %v63, %v497
    %v499 = vpop.f32.mrb[0].mxu0
    %500 = vmatprep.mubr.f32.mxu0 0.0
    %501 = vmatmul.mubr.f32.gmra.mrb[0].mxu0 %v415
    %v502 = vpop.f32.mrb[0].mxu0
    %v503 = vadd.f32 %v64, %v502
    %v504 = vpop.f32.mrb[0].mxu0
    %505 = vdwg.mxu0
    %vm506 = vcmask 146432
    %v507 = vsel %vm506, %v493, -inf
    %508 = vmax.xlane.f32.xlu0 %v507
    %v509 = vpop.xlane.xlu0 %508
    %v510 = vsel %vm506, %v498, -inf
    %511 = vmax.xlane.f32.xlu0 %v510
    %v512 = vpop.xlane.xlu0 %511
    %vm513 = vcmask 140288
    %v514 = vsel %vm513, %v503, -inf
    %515 = vmax.xlane.f32.xlu0 %v514
    %v516 = vpop.xlane.xlu0 %515
    %v517 = vsub.f32 %v493, %v509
    %v518 = vsub.f32 %v498, %v512
    %v519 = vsub.f32 %v503, %v516
    %v520 = vmul.f32 %v517, 1.442695
    %v521 = vpow.pop %v520
    %v522 = vmul.f32 %v518, 1.442695
    %v523 = vpow.pop %v522
    %v524 = vmul.f32 %v519, 1.442695
    %v525 = vpow.pop %v524
    %v526 = vsel %vm506, %v521, 0.0
    %527 = vadd.xlane.f32.xlu0 %v526
    %v528 = vpop.xlane.xlu0 %527
    %v529 = vsel %vm506, %v523, 0.0
    %530 = vadd.xlane.f32.xlu0 %v529
    %v531 = vpop.xlane.xlu0 %530
    %v532 = vsel %vm513, %v525, 0.0
    %533 = vadd.xlane.f32.xlu0 %v532
    %v534 = vpop.xlane.xlu0 %533
    %v535 = vrcp.pop %v528
    %v536 = vrcp.pop %v531
    %v537 = vrcp.pop %v534
    %v538 = vmul.f32 %v521, %v535
    %v539 = vmul.f32 %v523, %v536
    %v540 = vmul.f32 %v525, %v537
    %541 = vrot.lane.b32.xlu0 %v394, 96
    %v542 = vpop.permute.xlu0 %541
    %543 = vrot.lane.b32.xlu0 %v399, 96
    %v544 = vpop.permute.xlu0 %543
    %545 = vrot.lane.b32.xlu0 %v404, 96
    %v546 = vpop.permute.xlu0 %545
    %v550 = vsel %vm506, %v538, 0
    %v553 = vsel %vm506, %v539, 0
    %v556 = vsel %vm506, %v540, 0
    %vm558 = vcmask 1041408
    %v559 = vsel %vm558, %v546, 0
    %561 = vmatprep.subr.mxu0 0.0
    %562 = vmatpush1.msra.mxu0 %v542
    %563 = vmatprep.subr.mxu0 0.0
    %564 = vmatpush1.msra.mxu0 %v544
    %565 = vmatprep.subr.mxu0 0.0
    %566 = vmatpush1.msra.mxu0 %v559
    %567 = vmatprep.subr.mxu0 0.0
    %568 = vmatpush1.msra.mxu0 0.0
    %569 = vmatprep.subr.mxu0 0.0
    %570 = vmatpush1.msra.mxu0 0.0
    %571 = vmatprep.subr.mxu0 0.0
    %572 = vmatpush1.msra.mxu0 0.0
    %573 = vmatprep.subr.mxu0 0.0
    %574 = vmatpush1.msra.mxu0 0.0
    %575 = vmatprep.subr.mxu0 0.0
    %576 = vmatpush1.msra.mxu0 0.0
    %577 = vmatprep.subr.mxu0 0.0
    %578 = vmatpush1.msra.mxu0 0.0
    %579 = vmatprep.subr.mxu0 0.0
    %580 = vmatpush1.msra.mxu0 0.0
    %581 = vmatprep.subr.mxu0 0.0
    %582 = vmatpush1.msra.mxu0 0.0
    %583 = vmatprep.subr.mxu0 0.0
    %584 = vmatpush1.msra.mxu0 0.0
    %585 = vmatprep.subr.mxu0 0.0
    %586 = vmatpush1.msra.mxu0 0.0
    %587 = vmatprep.subr.mxu0 0.0
    %588 = vmatpush1.msra.mxu0 0.0
    %589 = vmatprep.subr.mxu0 0.0
    %590 = vmatpush1.msra.mxu0 0.0
    %591 = vmatprep.subr.mxu0 0.0
    %592 = vmatpush1.msra.mxu0 0.0
    %593 = vmatprep.subr.mxu0 0.0
    %594 = vmatpush1.msra.mxu0 0.0
    %595 = vmatprep.subr.mxu0 0.0
    %596 = vmatpush1.msra.mxu0 0.0
    %597 = vmatprep.subr.mxu0 0.0
    %598 = vmatpush1.msra.mxu0 0.0
    %599 = vmatprep.subr.mxu0 0.0
    %600 = vmatpush1.msra.mxu0 0.0
    %601 = vmatprep.subr.mxu0 0.0
    %602 = vmatpush1.msra.mxu0 0.0
    %603 = vmatprep.subr.mxu0 0.0
    %604 = vmatpush1.msra.mxu0 0.0
    %605 = vmatprep.subr.mxu0 0.0
    %606 = vmatpush1.msra.mxu0 0.0
    %607 = vmatprep.subr.mxu0 0.0
    %608 = vmatpush1.msra.mxu0 0.0
    %609 = vmatprep.subr.mxu0 0.0
    %610 = vmatpush1.msra.mxu0 0.0
    %611 = vmatprep.subr.mxu0 0.0
    %612 = vmatpush1.msra.mxu0 0.0
    %613 = vmatprep.subr.mxu0 0.0
    %614 = vmatpush1.msra.mxu0 0.0
    %615 = vmatprep.subr.mxu0 0.0
    %616 = vmatpush1.msra.mxu0 0.0
    %617 = vmatprep.subr.mxu0 0.0
    %618 = vmatpush1.msra.mxu0 0.0
    %619 = vmatprep.subr.mxu0 0.0
    %620 = vmatpush1.msra.mxu0 0.0
    %621 = vmatprep.subr.mxu0 0.0
    %622 = vmatpush1.msra.mxu0 0.0
    %623 = vmatprep.subr.mxu0 0.0
    %624 = vmatpush1.msra.mxu0 0.0
    %625 = vmatprep.mubr.f32.mxu0 0.0
    %626 = vmatmul.mubr.f32.gmra.mrb[0].mxu0 %v550
    %v627 = vpop.f32.mrb[0].mxu0
    %v628 = vadd.f32 0.0, %v627
    %v629 = vpop.f32.mrb[0].mxu0
    %630 = vmatprep.mubr.f32.mxu0 0.0
    %631 = vmatmul.mubr.f32.gmra.mrb[0].mxu0 %v553
    %v632 = vpop.f32.mrb[0].mxu0
    %v633 = vadd.f32 0.0, %v632
    %v634 = vpop.f32.mrb[0].mxu0
    %635 = vmatprep.mubr.f32.mxu0 0.0
    %636 = vmatmul.mubr.f32.gmra.mrb[0].mxu0 %v556
    %v637 = vpop.f32.mrb[0].mxu0
    %v638 = vadd.f32 0.0, %v637
    %v639 = vpop.f32.mrb[0].mxu0
    %640 = vdwg.mxu0
    %641 = vrot.lane.b32.xlu0 %v302, 120
    %v642 = vpop.permute.xlu0 %641
    %643 = vrot.lane.b32.xlu0 %v307, 120
    %v644 = vpop.permute.xlu0 %643
    %645 = vrot.lane.b32.xlu0 %v312, 120
    %v646 = vpop.permute.xlu0 %645
    %647 = vrot.lane.b32.xlu0 %v394, 120
    %v648 = vpop.permute.xlu0 %647
    %649 = vrot.lane.b32.xlu0 %v399, 120
    %v650 = vpop.permute.xlu0 %649
    %651 = vrot.lane.b32.xlu0 %v404, 120
    %v652 = vpop.permute.xlu0 %651
    %v653 = vsel %vm407, %v642, 0
    %v655 = vsel %vm407, %v644, 0
    %v657 = vsel %vm407, %v646, 0
    %v659 = vsel %vm407, %v648, 0
    %v661 = vsel %vm407, %v650, 0
    %v663 = vsel %vm407, %v652, 0
    %665 = vmatprep.subr.mxu0 0.0
    %666 = vmatpush1.xpose.msra.mxu0 %v659
    %667 = vmatprep.subr.mxu0 0.0
    %668 = vmatpush1.xpose.msra.mxu0 %v661
    %669 = vmatprep.subr.mxu0 0.0
    %670 = vmatpush1.xpose.msra.mxu0 %v663
    %671 = vmatprep.subr.mxu0 0.0
    %672 = vmatpush1.xpose.msra.mxu0 0.0
    %673 = vmatprep.subr.mxu0 0.0
    %674 = vmatpush1.xpose.msra.mxu0 0.0
    %675 = vmatprep.subr.mxu0 0.0
    %676 = vmatpush1.xpose.msra.mxu0 0.0
    %677 = vmatprep.subr.mxu0 0.0
    %678 = vmatpush1.xpose.msra.mxu0 0.0
    %679 = vmatprep.subr.mxu0 0.0
    %680 = vmatpush1.xpose.msra.mxu0 0.0
    %681 = vmatprep.subr.mxu0 0.0
    %682 = vmatpush1.xpose.msra.mxu0 0.0
    %683 = vmatprep.subr.mxu0 0.0
    %684 = vmatpush1.xpose.msra.mxu0 0.0
    %685 = vmatprep.subr.mxu0 0.0
    %686 = vmatpush1.xpose.msra.mxu0 0.0
    %687 = vmatprep.subr.mxu0 0.0
    %688 = vmatpush1.xpose.msra.mxu0 0.0
    %689 = vmatprep.subr.mxu0 0.0
    %690 = vmatpush1.xpose.msra.mxu0 0.0
    %691 = vmatprep.subr.mxu0 0.0
    %692 = vmatpush1.xpose.msra.mxu0 0.0
    %693 = vmatprep.subr.mxu0 0.0
    %694 = vmatpush1.xpose.msra.mxu0 0.0
    %695 = vmatprep.subr.mxu0 0.0
    %696 = vmatpush1.xpose.msra.mxu0 0.0
    %697 = vmatprep.subr.mxu0 0.0
    %698 = vmatpush1.xpose.msra.mxu0 0.0
    %699 = vmatprep.subr.mxu0 0.0
    %700 = vmatpush1.xpose.msra.mxu0 0.0
    %701 = vmatprep.subr.mxu0 0.0
    %702 = vmatpush1.xpose.msra.mxu0 0.0
    %703 = vmatprep.subr.mxu0 0.0
    %704 = vmatpush1.xpose.msra.mxu0 0.0
    %705 = vmatprep.subr.mxu0 0.0
    %706 = vmatpush1.xpose.msra.mxu0 0.0
    %707 = vmatprep.subr.mxu0 0.0
    %708 = vmatpush1.xpose.msra.mxu0 0.0
    %709 = vmatprep.subr.mxu0 0.0
    %710 = vmatpush1.xpose.msra.mxu0 0.0
    %711 = vmatprep.subr.mxu0 0.0
    %712 = vmatpush1.xpose.msra.mxu0 0.0
    %713 = vmatprep.subr.mxu0 0.0
    %714 = vmatpush1.xpose.msra.mxu0 0.0
    %715 = vmatprep.subr.mxu0 0.0
    %716 = vmatpush1.xpose.msra.mxu0 0.0
    %717 = vmatprep.subr.mxu0 0.0
    %718 = vmatpush1.xpose.msra.mxu0 0.0
    %719 = vmatprep.subr.mxu0 0.0
    %720 = vmatpush1.xpose.msra.mxu0 0.0
    %721 = vmatprep.subr.mxu0 0.0
    %722 = vmatpush1.xpose.msra.mxu0 0.0
    %723 = vmatprep.subr.mxu0 0.0
    %724 = vmatpush1.xpose.msra.mxu0 0.0
    %725 = vmatprep.subr.mxu0 0.0
    %726 = vmatpush1.xpose.msra.mxu0 0.0
    %727 = vmatprep.subr.mxu0 0.0
    %728 = vmatpush1.xpose.msra.mxu0 0.0
    %729 = vmatprep.mubr.f32.mxu0 0.0
    %730 = vmatmul.mubr.f32.gmra.mrb[0].mxu0 %v653
    %v731 = vpop.f32.mrb[0].mxu0
    %v732 = vadd.f32 %v62, %v731
    %v733 = vpop.f32.mrb[0].mxu0
    %734 = vmatprep.mubr.f32.mxu0 0.0
    %735 = vmatmul.mubr.f32.gmra.mrb[0].mxu0 %v655
    %v736 = vpop.f32.mrb[0].mxu0
    %v737 = vadd.f32 %v63, %v736
    %v738 = vpop.f32.mrb[0].mxu0
    %739 = vmatprep.mubr.f32.mxu0 0.0
    %740 = vmatmul.mubr.f32.gmra.mrb[0].mxu0 %v657
    %v741 = vpop.f32.mrb[0].mxu0
    %v742 = vadd.f32 %v64, %v741
    %v743 = vpop.f32.mrb[0].mxu0
    %744 = vdwg.mxu0
    %v745 = vsel %vm506, %v732, -inf
    %746 = vmax.xlane.f32.xlu0 %v745
    %v747 = vpop.xlane.xlu0 %746
    %v748 = vsel %vm506, %v737, -inf
    %749 = vmax.xlane.f32.xlu0 %v748
    %v750 = vpop.xlane.xlu0 %749
    %v751 = vsel %vm513, %v742, -inf
    %752 = vmax.xlane.f32.xlu0 %v751
    %v753 = vpop.xlane.xlu0 %752
    %v754 = vsub.f32 %v732, %v747
    %v755 = vsub.f32 %v737, %v750
    %v756 = vsub.f32 %v742, %v753
    %v757 = vmul.f32 %v754, 1.442695
    %v758 = vpow.pop %v757
    %v759 = vmul.f32 %v755, 1.442695
    %v760 = vpow.pop %v759
    %v761 = vmul.f32 %v756, 1.442695
    %v762 = vpow.pop %v761
    %v763 = vsel %vm506, %v758, 0.0
    %764 = vadd.xlane.f32.xlu0 %v763
    %v765 = vpop.xlane.xlu0 %764
    %v766 = vsel %vm506, %v760, 0.0
    %767 = vadd.xlane.f32.xlu0 %v766
    %v768 = vpop.xlane.xlu0 %767
    %v769 = vsel %vm513, %v762, 0.0
    %770 = vadd.xlane.f32.xlu0 %v769
    %v771 = vpop.xlane.xlu0 %770
    %v772 = vrcp.pop %v765
    %v773 = vrcp.pop %v768
    %v774 = vrcp.pop %v771
    %v775 = vmul.f32 %v758, %v772
    %v776 = vmul.f32 %v760, %v773
    %v777 = vmul.f32 %v762, %v774
    %778 = vrot.lane.b32.xlu0 %v394, 88
    %v779 = vpop.permute.xlu0 %778
    %780 = vrot.lane.b32.xlu0 %v399, 88
    %v781 = vpop.permute.xlu0 %780
    %782 = vrot.lane.b32.xlu0 %v404, 88
    %v783 = vpop.permute.xlu0 %782
    %v787 = vsel %vm506, %v775, 0
    %v790 = vsel %vm506, %v776, 0
    %v793 = vsel %vm506, %v777, 0
    %v795 = vsel %vm558, %v783, 0
    %797 = vmatprep.subr.mxu0 0.0
    %798 = vmatpush1.msra.mxu0 %v779
    %799 = vmatprep.subr.mxu0 0.0
    %800 = vmatpush1.msra.mxu0 %v781
    %801 = vmatprep.subr.mxu0 0.0
    %802 = vmatpush1.msra.mxu0 %v795
    %803 = vmatprep.subr.mxu0 0.0
    %804 = vmatpush1.msra.mxu0 0.0
    %805 = vmatprep.subr.mxu0 0.0
    %806 = vmatpush1.msra.mxu0 0.0
    %807 = vmatprep.subr.mxu0 0.0
    %808 = vmatpush1.msra.mxu0 0.0
    %809 = vmatprep.subr.mxu0 0.0
    %810 = vmatpush1.msra.mxu0 0.0
    %811 = vmatprep.subr.mxu0 0.0
    %812 = vmatpush1.msra.mxu0 0.0
    %813 = vmatprep.subr.mxu0 0.0
    %814 = vmatpush1.msra.mxu0 0.0
    %815 = vmatprep.subr.mxu0 0.0
    %816 = vmatpush1.msra.mxu0 0.0
    %817 = vmatprep.subr.mxu0 0.0
    %818 = vmatpush1.msra.mxu0 0.0
    %819 = vmatprep.subr.mxu0 0.0
    %820 = vmatpush1.msra.mxu0 0.0
    %821 = vmatprep.subr.mxu0 0.0
    %822 = vmatpush1.msra.mxu0 0.0
    %823 = vmatprep.subr.mxu0 0.0
    %824 = vmatpush1.msra.mxu0 0.0
    %825 = vmatprep.subr.mxu0 0.0
    %826 = vmatpush1.msra.mxu0 0.0
    %827 = vmatprep.subr.mxu0 0.0
    %828 = vmatpush1.msra.mxu0 0.0
    %829 = vmatprep.subr.mxu0 0.0
    %830 = vmatpush1.msra.mxu0 0.0
    %831 = vmatprep.subr.mxu0 0.0
    %832 = vmatpush1.msra.mxu0 0.0
    %833 = vmatprep.subr.mxu0 0.0
    %834 = vmatpush1.msra.mxu0 0.0
    %835 = vmatprep.subr.mxu0 0.0
    %836 = vmatpush1.msra.mxu0 0.0
    %837 = vmatprep.subr.mxu0 0.0
    %838 = vmatpush1.msra.mxu0 0.0
    %839 = vmatprep.subr.mxu0 0.0
    %840 = vmatpush1.msra.mxu0 0.0
    %841 = vmatprep.subr.mxu0 0.0
    %842 = vmatpush1.msra.mxu0 0.0
    %843 = vmatprep.subr.mxu0 0.0
    %844 = vmatpush1.msra.mxu0 0.0
    %845 = vmatprep.subr.mxu0 0.0
    %846 = vmatpush1.msra.mxu0 0.0
    %847 = vmatprep.subr.mxu0 0.0
    %848 = vmatpush1.msra.mxu0 0.0
    %849 = vmatprep.subr.mxu0 0.0
    %850 = vmatpush1.msra.mxu0 0.0
    %851 = vmatprep.subr.mxu0 0.0
    %852 = vmatpush1.msra.mxu0 0.0
    %853 = vmatprep.subr.mxu0 0.0
    %854 = vmatpush1.msra.mxu0 0.0
    %855 = vmatprep.subr.mxu0 0.0
    %856 = vmatpush1.msra.mxu0 0.0
    %857 = vmatprep.subr.mxu0 0.0
    %858 = vmatpush1.msra.mxu0 0.0
    %859 = vmatprep.subr.mxu0 0.0
    %860 = vmatpush1.msra.mxu0 0.0
    %861 = vmatprep.mubr.f32.mxu0 0.0
    %862 = vmatmul.mubr.f32.gmra.mrb[0].mxu0 %v787
    %v863 = vpop.f32.mrb[0].mxu0
    %v864 = vadd.f32 0.0, %v863
    %v865 = vpop.f32.mrb[0].mxu0
    %866 = vmatprep.mubr.f32.mxu0 0.0
    %867 = vmatmul.mubr.f32.gmra.mrb[0].mxu0 %v790
    %v868 = vpop.f32.mrb[0].mxu0
    %v869 = vadd.f32 0.0, %v868
    %v870 = vpop.f32.mrb[0].mxu0
    %871 = vmatprep.mubr.f32.mxu0 0.0
    %872 = vmatmul.mubr.f32.gmra.mrb[0].mxu0 %v793
    %v873 = vpop.f32.mrb[0].mxu0
    %v874 = vadd.f32 0.0, %v873
    %v875 = vpop.f32.mrb[0].mxu0
    %876 = vdwg.mxu0
    %877 = vrot.lane.b32.xlu0 %v302, 112
    %v878 = vpop.permute.xlu0 %877
    %879 = vrot.lane.b32.xlu0 %v307, 112
    %v880 = vpop.permute.xlu0 %879
    %881 = vrot.lane.b32.xlu0 %v312, 112
    %v882 = vpop.permute.xlu0 %881
    %883 = vrot.lane.b32.xlu0 %v394, 112
    %v884 = vpop.permute.xlu0 %883
    %885 = vrot.lane.b32.xlu0 %v399, 112
    %v886 = vpop.permute.xlu0 %885
    %887 = vrot.lane.b32.xlu0 %v404, 112
    %v888 = vpop.permute.xlu0 %887
    %v889 = vsel %vm407, %v878, 0
    %v891 = vsel %vm407, %v880, 0
    %v893 = vsel %vm407, %v882, 0
    %v895 = vsel %vm407, %v884, 0
    %v897 = vsel %vm407, %v886, 0
    %v899 = vsel %vm407, %v888, 0
    %901 = vmatprep.subr.mxu0 0.0
    %902 = vmatpush1.xpose.msra.mxu0 %v895
    %903 = vmatprep.subr.mxu0 0.0
    %904 = vmatpush1.xpose.msra.mxu0 %v897
    %905 = vmatprep.subr.mxu0 0.0
    %906 = vmatpush1.xpose.msra.mxu0 %v899
    %907 = vmatprep.subr.mxu0 0.0
    %908 = vmatpush1.xpose.msra.mxu0 0.0
    %909 = vmatprep.subr.mxu0 0.0
    %910 = vmatpush1.xpose.msra.mxu0 0.0
    %911 = vmatprep.subr.mxu0 0.0
    %912 = vmatpush1.xpose.msra.mxu0 0.0
    %913 = vmatprep.subr.mxu0 0.0
    %914 = vmatpush1.xpose.msra.mxu0 0.0
    %915 = vmatprep.subr.mxu0 0.0
    %916 = vmatpush1.xpose.msra.mxu0 0.0
    %917 = vmatprep.subr.mxu0 0.0
    %918 = vmatpush1.xpose.msra.mxu0 0.0
    %919 = vmatprep.subr.mxu0 0.0
    %920 = vmatpush1.xpose.msra.mxu0 0.0
    %921 = vmatprep.subr.mxu0 0.0
    %922 = vmatpush1.xpose.msra.mxu0 0.0
    %923 = vmatprep.subr.mxu0 0.0
    %924 = vmatpush1.xpose.msra.mxu0 0.0
    %925 = vmatprep.subr.mxu0 0.0
    %926 = vmatpush1.xpose.msra.mxu0 0.0
    %927 = vmatprep.subr.mxu0 0.0
    %928 = vmatpush1.xpose.msra.mxu0 0.0
    %929 = vmatprep.subr.mxu0 0.0
    %930 = vmatpush1.xpose.msra.mxu0 0.0
    %931 = vmatprep.subr.mxu0 0.0
    %932 = vmatpush1.xpose.msra.mxu0 0.0
    %933 = vmatprep.subr.mxu0 0.0
    %934 = vmatpush1.xpose.msra.mxu0 0.0
    %935 = vmatprep.subr.mxu0 0.0
    %936 = vmatpush1.xpose.msra.mxu0 0.0
    %937 = vmatprep.subr.mxu0 0.0
    %938 = vmatpush1.xpose.msra.mxu0 0.0
    %939 = vmatprep.subr.mxu0 0.0
    %940 = vmatpush1.xpose.msra.mxu0 0.0
    %941 = vmatprep.subr.mxu0 0.0
    %942 = vmatpush1.xpose.msra.mxu0 0.0
    %943 = vmatprep.subr.mxu0 0.0
    %944 = vmatpush1.xpose.msra.mxu0 0.0
    %945 = vmatprep.subr.mxu0 0.0
    %946 = vmatpush1.xpose.msra.mxu0 0.0
    %947 = vmatprep.subr.mxu0 0.0
    %948 = vmatpush1.xpose.msra.mxu0 0.0
    %949 = vmatprep.subr.mxu0 0.0
    %950 = vmatpush1.xpose.msra.mxu0 0.0
    %951 = vmatprep.subr.mxu0 0.0
    %952 = vmatpush1.xpose.msra.mxu0 0.0
    %953 = vmatprep.subr.mxu0 0.0
    %954 = vmatpush1.xpose.msra.mxu0 0.0
    %955 = vmatprep.subr.mxu0 0.0
    %956 = vmatpush1.xpose.msra.mxu0 0.0
    %957 = vmatprep.subr.mxu0 0.0
    %958 = vmatpush1.xpose.msra.mxu0 0.0
    %959 = vmatprep.subr.mxu0 0.0
    %960 = vmatpush1.xpose.msra.mxu0 0.0
    %961 = vmatprep.subr.mxu0 0.0
    %962 = vmatpush1.xpose.msra.mxu0 0.0
    %963 = vmatprep.subr.mxu0 0.0
    %964 = vmatpush1.xpose.msra.mxu0 0.0
    %965 = vmatprep.mubr.f32.mxu0 0.0
    %966 = vmatmul.mubr.f32.gmra.mrb[0].mxu0 %v889
    %v967 = vpop.f32.mrb[0].mxu0
    %v968 = vadd.f32 %v62, %v967
    %v969 = vpop.f32.mrb[0].mxu0
    %970 = vmatprep.mubr.f32.mxu0 0.0
    %971 = vmatmul.mubr.f32.gmra.mrb[0].mxu0 %v891
    %v972 = vpop.f32.mrb[0].mxu0
    %v973 = vadd.f32 %v63, %v972
    %v974 = vpop.f32.mrb[0].mxu0
    %975 = vmatprep.mubr.f32.mxu0 0.0
    %976 = vmatmul.mubr.f32.gmra.mrb[0].mxu0 %v893
    %v977 = vpop.f32.mrb[0].mxu0
    %v978 = vadd.f32 %v64, %v977
    %v979 = vpop.f32.mrb[0].mxu0
    %980 = vdwg.mxu0
    %v981 = vsel %vm506, %v968, -inf
    %982 = vmax.xlane.f32.xlu0 %v981
    %v983 = vpop.xlane.xlu0 %982
    %v984 = vsel %vm506, %v973, -inf
    %985 = vmax.xlane.f32.xlu0 %v984
    %v986 = vpop.xlane.xlu0 %985
    %v987 = vsel %vm513, %v978, -inf
    %988 = vmax.xlane.f32.xlu0 %v987
    %v989 = vpop.xlane.xlu0 %988
    %v990 = vsub.f32 %v968, %v983
    %v991 = vsub.f32 %v973, %v986
    %v992 = vsub.f32 %v978, %v989
    %v993 = vmul.f32 %v990, 1.442695
    %v994 = vpow.pop %v993
    %v995 = vmul.f32 %v991, 1.442695
    %v996 = vpow.pop %v995
    %v997 = vmul.f32 %v992, 1.442695
    %v998 = vpow.pop %v997
    %v999 = vsel %vm506, %v994, 0.0
    %1000 = vadd.xlane.f32.xlu0 %v999
    %v1001 = vpop.xlane.xlu0 %1000
    %v1002 = vsel %vm506, %v996, 0.0
    %1003 = vadd.xlane.f32.xlu0 %v1002
    %v1004 = vpop.xlane.xlu0 %1003
    %v1005 = vsel %vm513, %v998, 0.0
    %1006 = vadd.xlane.f32.xlu0 %v1005
    %v1007 = vpop.xlane.xlu0 %1006
    %v1008 = vrcp.pop %v1001
    %v1009 = vrcp.pop %v1004
    %v1010 = vrcp.pop %v1007
    %v1011 = vmul.f32 %v994, %v1008
    %v1012 = vmul.f32 %v996, %v1009
    %v1013 = vmul.f32 %v998, %v1010
    %1014 = vrot.lane.b32.xlu0 %v394, 80
    %v1015 = vpop.permute.xlu0 %1014
    %1016 = vrot.lane.b32.xlu0 %v399, 80
    %v1017 = vpop.permute.xlu0 %1016
    %1018 = vrot.lane.b32.xlu0 %v404, 80
    %v1019 = vpop.permute.xlu0 %1018
    %v1023 = vsel %vm506, %v1011, 0
    %v1026 = vsel %vm506, %v1012, 0
    %v1029 = vsel %vm506, %v1013, 0
    %v1031 = vsel %vm558, %v1019, 0
    %1033 = vmatprep.subr.mxu0 0.0
    %1034 = vmatpush1.msra.mxu0 %v1015
    %1035 = vmatprep.subr.mxu0 0.0
    %1036 = vmatpush1.msra.mxu0 %v1017
    %1037 = vmatprep.subr.mxu0 0.0
    %1038 = vmatpush1.msra.mxu0 %v1031
    %1039 = vmatprep.subr.mxu0 0.0
    %1040 = vmatpush1.msra.mxu0 0.0
    %1041 = vmatprep.subr.mxu0 0.0
    %1042 = vmatpush1.msra.mxu0 0.0
    %1043 = vmatprep.subr.mxu0 0.0
    %1044 = vmatpush1.msra.mxu0 0.0
    %1045 = vmatprep.subr.mxu0 0.0
    %1046 = vmatpush1.msra.mxu0 0.0
    %1047 = vmatprep.subr.mxu0 0.0
    %1048 = vmatpush1.msra.mxu0 0.0
    %1049 = vmatprep.subr.mxu0 0.0
    %1050 = vmatpush1.msra.mxu0 0.0
    %1051 = vmatprep.subr.mxu0 0.0
    %1052 = vmatpush1.msra.mxu0 0.0
    %1053 = vmatprep.subr.mxu0 0.0
    %1054 = vmatpush1.msra.mxu0 0.0
    %1055 = vmatprep.subr.mxu0 0.0
    %1056 = vmatpush1.msra.mxu0 0.0
    %1057 = vmatprep.subr.mxu0 0.0
    %1058 = vmatpush1.msra.mxu0 0.0
    %1059 = vmatprep.subr.mxu0 0.0
    %1060 = vmatpush1.msra.mxu0 0.0
    %1061 = vmatprep.subr.mxu0 0.0
    %1062 = vmatpush1.msra.mxu0 0.0
    %1063 = vmatprep.subr.mxu0 0.0
    %1064 = vmatpush1.msra.mxu0 0.0
    %1065 = vmatprep.subr.mxu0 0.0
    %1066 = vmatpush1.msra.mxu0 0.0
    %1067 = vmatprep.subr.mxu0 0.0
    %1068 = vmatpush1.msra.mxu0 0.0
    %1069 = vmatprep.subr.mxu0 0.0
    %1070 = vmatpush1.msra.mxu0 0.0
    %1071 = vmatprep.subr.mxu0 0.0
    %1072 = vmatpush1.msra.mxu0 0.0
    %1073 = vmatprep.subr.mxu0 0.0
    %1074 = vmatpush1.msra.mxu0 0.0
    %1075 = vmatprep.subr.mxu0 0.0
    %1076 = vmatpush1.msra.mxu0 0.0
    %1077 = vmatprep.subr.mxu0 0.0
    %1078 = vmatpush1.msra.mxu0 0.0
    %1079 = vmatprep.subr.mxu0 0.0
    %1080 = vmatpush1.msra.mxu0 0.0
    %1081 = vmatprep.subr.mxu0 0.0
    %1082 = vmatpush1.msra.mxu0 0.0
    %1083 = vmatprep.subr.mxu0 0.0
    %1084 = vmatpush1.msra.mxu0 0.0
    %1085 = vmatprep.subr.mxu0 0.0
    %1086 = vmatpush1.msra.mxu0 0.0
    %1087 = vmatprep.subr.mxu0 0.0
    %1088 = vmatpush1.msra.mxu0 0.0
    %1089 = vmatprep.subr.mxu0 0.0
    %1090 = vmatpush1.msra.mxu0 0.0
    %1091 = vmatprep.subr.mxu0 0.0
    %1092 = vmatpush1.msra.mxu0 0.0
    %1093 = vmatprep.subr.mxu0 0.0
    %1094 = vmatpush1.msra.mxu0 0.0
    %1095 = vmatprep.subr.mxu0 0.0
    %1096 = vmatpush1.msra.mxu0 0.0
    %1097 = vmatprep.mubr.f32.mxu0 0.0
    %1098 = vmatmul.mubr.f32.gmra.mrb[0].mxu0 %v1023
    %v1099 = vpop.f32.mrb[0].mxu0
    %v1100 = vadd.f32 0.0, %v1099
    %v1101 = vpop.f32.mrb[0].mxu0
    %1102 = vmatprep.mubr.f32.mxu0 0.0
    %1103 = vmatmul.mubr.f32.gmra.mrb[0].mxu0 %v1026
    %v1104 = vpop.f32.mrb[0].mxu0
    %v1105 = vadd.f32 0.0, %v1104
    %v1106 = vpop.f32.mrb[0].mxu0
    %1107 = vmatprep.mubr.f32.mxu0 0.0
    %1108 = vmatmul.mubr.f32.gmra.mrb[0].mxu0 %v1029
    %v1109 = vpop.f32.mrb[0].mxu0
    %v1110 = vadd.f32 0.0, %v1109
    %v1111 = vpop.f32.mrb[0].mxu0
    %1112 = vdwg.mxu0
    %1113 = vrot.lane.b32.xlu0 %v302, 104
    %v1114 = vpop.permute.xlu0 %1113
    %1115 = vrot.lane.b32.xlu0 %v307, 104
    %v1116 = vpop.permute.xlu0 %1115
    %1117 = vrot.lane.b32.xlu0 %v312, 104
    %v1118 = vpop.permute.xlu0 %1117
    %1119 = vrot.lane.b32.xlu0 %v394, 104
    %v1120 = vpop.permute.xlu0 %1119
    %1121 = vrot.lane.b32.xlu0 %v399, 104
    %v1122 = vpop.permute.xlu0 %1121
    %1123 = vrot.lane.b32.xlu0 %v404, 104
    %v1124 = vpop.permute.xlu0 %1123
    %v1125 = vsel %vm407, %v1114, 0
    %v1127 = vsel %vm407, %v1116, 0
    %v1129 = vsel %vm407, %v1118, 0
    %v1131 = vsel %vm407, %v1120, 0
    %v1133 = vsel %vm407, %v1122, 0
    %v1135 = vsel %vm407, %v1124, 0
    %1137 = vmatprep.subr.mxu0 0.0
    %1138 = vmatpush1.xpose.msra.mxu0 %v1131
    %1139 = vmatprep.subr.mxu0 0.0
    %1140 = vmatpush1.xpose.msra.mxu0 %v1133
    %1141 = vmatprep.subr.mxu0 0.0
    %1142 = vmatpush1.xpose.msra.mxu0 %v1135
    %1143 = vmatprep.subr.mxu0 0.0
    %1144 = vmatpush1.xpose.msra.mxu0 0.0
    %1145 = vmatprep.subr.mxu0 0.0
    %1146 = vmatpush1.xpose.msra.mxu0 0.0
    %1147 = vmatprep.subr.mxu0 0.0
    %1148 = vmatpush1.xpose.msra.mxu0 0.0
    %1149 = vmatprep.subr.mxu0 0.0
    %1150 = vmatpush1.xpose.msra.mxu0 0.0
    %1151 = vmatprep.subr.mxu0 0.0
    %1152 = vmatpush1.xpose.msra.mxu0 0.0
    %1153 = vmatprep.subr.mxu0 0.0
    %1154 = vmatpush1.xpose.msra.mxu0 0.0
    %1155 = vmatprep.subr.mxu0 0.0
    %1156 = vmatpush1.xpose.msra.mxu0 0.0
    %1157 = vmatprep.subr.mxu0 0.0
    %1158 = vmatpush1.xpose.msra.mxu0 0.0
    %1159 = vmatprep.subr.mxu0 0.0
    %1160 = vmatpush1.xpose.msra.mxu0 0.0
    %1161 = vmatprep.subr.mxu0 0.0
    %1162 = vmatpush1.xpose.msra.mxu0 0.0
    %1163 = vmatprep.subr.mxu0 0.0
    %1164 = vmatpush1.xpose.msra.mxu0 0.0
    %1165 = vmatprep.subr.mxu0 0.0
    %1166 = vmatpush1.xpose.msra.mxu0 0.0
    %1167 = vmatprep.subr.mxu0 0.0
    %1168 = vmatpush1.xpose.msra.mxu0 0.0
    %1169 = vmatprep.subr.mxu0 0.0
    %1170 = vmatpush1.xpose.msra.mxu0 0.0
    %1171 = vmatprep.subr.mxu0 0.0
    %1172 = vmatpush1.xpose.msra.mxu0 0.0
    %1173 = vmatprep.subr.mxu0 0.0
    %1174 = vmatpush1.xpose.msra.mxu0 0.0
    %1175 = vmatprep.subr.mxu0 0.0
    %1176 = vmatpush1.xpose.msra.mxu0 0.0
    %1177 = vmatprep.subr.mxu0 0.0
    %1178 = vmatpush1.xpose.msra.mxu0 0.0
    %1179 = vmatprep.subr.mxu0 0.0
    %1180 = vmatpush1.xpose.msra.mxu0 0.0
    %1181 = vmatprep.subr.mxu0 0.0
    %1182 = vmatpush1.xpose.msra.mxu0 0.0
    %1183 = vmatprep.subr.mxu0 0.0
    %1184 = vmatpush1.xpose.msra.mxu0 0.0
    %1185 = vmatprep.subr.mxu0 0.0
    %1186 = vmatpush1.xpose.msra.mxu0 0.0
    %1187 = vmatprep.subr.mxu0 0.0
    %1188 = vmatpush1.xpose.msra.mxu0 0.0
    %1189 = vmatprep.subr.mxu0 0.0
    %1190 = vmatpush1.xpose.msra.mxu0 0.0
    %1191 = vmatprep.subr.mxu0 0.0
    %1192 = vmatpush1.xpose.msra.mxu0 0.0
    %1193 = vmatprep.subr.mxu0 0.0
    %1194 = vmatpush1.xpose.msra.mxu0 0.0
    %1195 = vmatprep.subr.mxu0 0.0
    %1196 = vmatpush1.xpose.msra.mxu0 0.0
    %1197 = vmatprep.subr.mxu0 0.0
    %1198 = vmatpush1.xpose.msra.mxu0 0.0
    %1199 = vmatprep.subr.mxu0 0.0
    %1200 = vmatpush1.xpose.msra.mxu0 0.0
    %1201 = vmatprep.mubr.f32.mxu0 0.0
    %1202 = vmatmul.mubr.f32.gmra.mrb[0].mxu0 %v1125
    %v1203 = vpop.f32.mrb[0].mxu0
    %v1204 = vadd.f32 %v62, %v1203
    %v1205 = vpop.f32.mrb[0].mxu0
    %1206 = vmatprep.mubr.f32.mxu0 0.0
    %1207 = vmatmul.mubr.f32.gmra.mrb[0].mxu0 %v1127
    %v1208 = vpop.f32.mrb[0].mxu0
    %v1209 = vadd.f32 %v63, %v1208
    %v1210 = vpop.f32.mrb[0].mxu0
    %1211 = vmatprep.mubr.f32.mxu0 0.0
    %1212 = vmatmul.mubr.f32.gmra.mrb[0].mxu0 %v1129
    %v1213 = vpop.f32.mrb[0].mxu0
    %v1214 = vadd.f32 %v64, %v1213
    %v1215 = vpop.f32.mrb[0].mxu0
    %1216 = vdwg.mxu0
    %v1217 = vsel %vm506, %v1204, -inf
    %1218 = vmax.xlane.f32.xlu0 %v1217
    %v1219 = vpop.xlane.xlu0 %1218
    %v1220 = vsel %vm506, %v1209, -inf
    %1221 = vmax.xlane.f32.xlu0 %v1220
    %v1222 = vpop.xlane.xlu0 %1221
    %v1223 = vsel %vm513, %v1214, -inf
    %1224 = vmax.xlane.f32.xlu0 %v1223
    %v1225 = vpop.xlane.xlu0 %1224
    %v1226 = vsub.f32 %v1204, %v1219
    %v1227 = vsub.f32 %v1209, %v1222
    %v1228 = vsub.f32 %v1214, %v1225
    %v1229 = vmul.f32 %v1226, 1.442695
    %v1230 = vpow.pop %v1229
    %v1231 = vmul.f32 %v1227, 1.442695
    %v1232 = vpow.pop %v1231
    %v1233 = vmul.f32 %v1228, 1.442695
    %v1234 = vpow.pop %v1233
    %v1235 = vsel %vm506, %v1230, 0.0
    %1236 = vadd.xlane.f32.xlu0 %v1235
    %v1237 = vpop.xlane.xlu0 %1236
    %v1238 = vsel %vm506, %v1232, 0.0
    %1239 = vadd.xlane.f32.xlu0 %v1238
    %v1240 = vpop.xlane.xlu0 %1239
    %v1241 = vsel %vm513, %v1234, 0.0
    %1242 = vadd.xlane.f32.xlu0 %v1241
    %v1243 = vpop.xlane.xlu0 %1242
    %v1244 = vrcp.pop %v1237
    %v1245 = vrcp.pop %v1240
    %v1246 = vrcp.pop %v1243
    %v1247 = vmul.f32 %v1230, %v1244
    %v1248 = vmul.f32 %v1232, %v1245
    %v1249 = vmul.f32 %v1234, %v1246
    %1250 = vrot.lane.b32.xlu0 %v394, 72
    %v1251 = vpop.permute.xlu0 %1250
    %1252 = vrot.lane.b32.xlu0 %v399, 72
    %v1253 = vpop.permute.xlu0 %1252
    %1254 = vrot.lane.b32.xlu0 %v404, 72
    %v1255 = vpop.permute.xlu0 %1254
    %v1259 = vsel %vm506, %v1247, 0
    %v1262 = vsel %vm506, %v1248, 0
    %v1265 = vsel %vm506, %v1249, 0
    %v1267 = vsel %vm558, %v1255, 0
    %1269 = vmatprep.subr.mxu0 0.0
    %1270 = vmatpush1.msra.mxu0 %v1251
    %1271 = vmatprep.subr.mxu0 0.0
    %1272 = vmatpush1.msra.mxu0 %v1253
    %1273 = vmatprep.subr.mxu0 0.0
    %1274 = vmatpush1.msra.mxu0 %v1267
    %1275 = vmatprep.subr.mxu0 0.0
    %1276 = vmatpush1.msra.mxu0 0.0
    %1277 = vmatprep.subr.mxu0 0.0
    %1278 = vmatpush1.msra.mxu0 0.0
    %1279 = vmatprep.subr.mxu0 0.0
    %1280 = vmatpush1.msra.mxu0 0.0
    %1281 = vmatprep.subr.mxu0 0.0
    %1282 = vmatpush1.msra.mxu0 0.0
    %1283 = vmatprep.subr.mxu0 0.0
    %1284 = vmatpush1.msra.mxu0 0.0
    %1285 = vmatprep.subr.mxu0 0.0
    %1286 = vmatpush1.msra.mxu0 0.0
    %1287 = vmatprep.subr.mxu0 0.0
    %1288 = vmatpush1.msra.mxu0 0.0
    %1289 = vmatprep.subr.mxu0 0.0
    %1290 = vmatpush1.msra.mxu0 0.0
    %1291 = vmatprep.subr.mxu0 0.0
    %1292 = vmatpush1.msra.mxu0 0.0
    %1293 = vmatprep.subr.mxu0 0.0
    %1294 = vmatpush1.msra.mxu0 0.0
    %1295 = vmatprep.subr.mxu0 0.0
    %1296 = vmatpush1.msra.mxu0 0.0
    %1297 = vmatprep.subr.mxu0 0.0
    %1298 = vmatpush1.msra.mxu0 0.0
    %1299 = vmatprep.subr.mxu0 0.0
    %1300 = vmatpush1.msra.mxu0 0.0
    %1301 = vmatprep.subr.mxu0 0.0
    %1302 = vmatpush1.msra.mxu0 0.0
    %1303 = vmatprep.subr.mxu0 0.0
    %1304 = vmatpush1.msra.mxu0 0.0
    %1305 = vmatprep.subr.mxu0 0.0
    %1306 = vmatpush1.msra.mxu0 0.0
    %1307 = vmatprep.subr.mxu0 0.0
    %1308 = vmatpush1.msra.mxu0 0.0
    %1309 = vmatprep.subr.mxu0 0.0
    %1310 = vmatpush1.msra.mxu0 0.0
    %1311 = vmatprep.subr.mxu0 0.0
    %1312 = vmatpush1.msra.mxu0 0.0
    %1313 = vmatprep.subr.mxu0 0.0
    %1314 = vmatpush1.msra.mxu0 0.0
    %1315 = vmatprep.subr.mxu0 0.0
    %1316 = vmatpush1.msra.mxu0 0.0
    %1317 = vmatprep.subr.mxu0 0.0
    %1318 = vmatpush1.msra.mxu0 0.0
    %1319 = vmatprep.subr.mxu0 0.0
    %1320 = vmatpush1.msra.mxu0 0.0
    %1321 = vmatprep.subr.mxu0 0.0
    %1322 = vmatpush1.msra.mxu0 0.0
    %1323 = vmatprep.subr.mxu0 0.0
    %1324 = vmatpush1.msra.mxu0 0.0
    %1325 = vmatprep.subr.mxu0 0.0
    %1326 = vmatpush1.msra.mxu0 0.0
    %1327 = vmatprep.subr.mxu0 0.0
    %1328 = vmatpush1.msra.mxu0 0.0
    %1329 = vmatprep.subr.mxu0 0.0
    %1330 = vmatpush1.msra.mxu0 0.0
    %1331 = vmatprep.subr.mxu0 0.0
    %1332 = vmatpush1.msra.mxu0 0.0
    %1333 = vmatprep.mubr.f32.mxu0 0.0
    %1334 = vmatmul.mubr.f32.gmra.mrb[0].mxu0 %v1259
    %v1335 = vpop.f32.mrb[0].mxu0
    %v1336 = vadd.f32 0.0, %v1335
    %v1337 = vpop.f32.mrb[0].mxu0
    %1338 = vmatprep.mubr.f32.mxu0 0.0
    %1339 = vmatmul.mubr.f32.gmra.mrb[0].mxu0 %v1262
    %v1340 = vpop.f32.mrb[0].mxu0
    %v1341 = vadd.f32 0.0, %v1340
    %v1342 = vpop.f32.mrb[0].mxu0
    %1343 = vmatprep.mubr.f32.mxu0 0.0
    %1344 = vmatmul.mubr.f32.gmra.mrb[0].mxu0 %v1265
    %v1345 = vpop.f32.mrb[0].mxu0
    %v1346 = vadd.f32 0.0, %v1345
    %v1347 = vpop.f32.mrb[0].mxu0
    %1348 = vdwg.mxu0
    %1352 = vrot.lane.b32.xlu0 %v864, 8
    %v1353 = vpop.permute.xlu0 %1352
    %1354 = vrot.lane.b32.xlu0 %v869, 8
    %v1355 = vpop.permute.xlu0 %1354
    %1356 = vrot.lane.b32.xlu0 %v874, 8
    %v1357 = vpop.permute.xlu0 %1356
    %1364 = vrot.lane.b32.xlu0 %v1100, 16
    %v1365 = vpop.permute.xlu0 %1364
    %1366 = vrot.lane.b32.xlu0 %v1105, 16
    %v1367 = vpop.permute.xlu0 %1366
    %1368 = vrot.lane.b32.xlu0 %v1110, 16
    %v1369 = vpop.permute.xlu0 %1368
    %1376 = vrot.lane.b32.xlu0 %v1336, 24
    %v1377 = vpop.permute.xlu0 %1376
    %1378 = vrot.lane.b32.xlu0 %v1341, 24
    %v1379 = vpop.permute.xlu0 %1378
    %1380 = vrot.lane.b32.xlu0 %v1346, 24
    %v1381 = vpop.permute.xlu0 %1380
    %v1385 = vsel %vm407, %v628, %v1353
    %v1386 = vsel %vm407, %v633, %v1355
    %v1387 = vsel %vm407, %v638, %v1357
    %vm1388 = vcmask 130048
    %v1389 = vsel %vm1388, %v1385, %v1365
    %v1390 = vsel %vm1388, %v1386, %v1367
    %v1391 = vsel %vm1388, %v1387, %v1369
    %vm1392 = vcmask 195584
    %v1393 = vsel %vm1392, %v1389, %v1377
    %v1394 = vsel %vm1392, %v1390, %v1379
    %v1395 = vsel %vm1392, %v1391, %v1381
    %v1397 = vsel %vm65, %v1393, 0
    %v1400 = vsel %vm65, %v1394, 0
    %v1403 = vsel %vm65, %v1395, 0
    %1405 = vmatprep.subr.mxu0 0.0
    %1406 = vmatpush1.msra.mxu0 %v53
    %1407 = vmatprep.subr.mxu0 0.0
    %1408 = vmatpush1.msra.mxu0 %v56
    %1409 = vmatprep.subr.mxu0 0.0
    %1410 = vmatpush1.msra.mxu0 %v59
    %1411 = vmatprep.subr.mxu0 0.0
    %1412 = vmatpush1.msra.mxu0 %v61
    %1413 = vmatprep.subr.mxu0 0.0
    %1414 = vmatpush1.msra.mxu0 0.0
    %1415 = vmatprep.subr.mxu0 0.0
    %1416 = vmatpush1.msra.mxu0 0.0
    %1417 = vmatprep.subr.mxu0 0.0
    %1418 = vmatpush1.msra.mxu0 0.0
    %1419 = vmatprep.subr.mxu0 0.0
    %1420 = vmatpush1.msra.mxu0 0.0
    %1421 = vmatprep.subr.mxu0 0.0
    %1422 = vmatpush1.msra.mxu0 0.0
    %1423 = vmatprep.subr.mxu0 0.0
    %1424 = vmatpush1.msra.mxu0 0.0
    %1425 = vmatprep.subr.mxu0 0.0
    %1426 = vmatpush1.msra.mxu0 0.0
    %1427 = vmatprep.subr.mxu0 0.0
    %1428 = vmatpush1.msra.mxu0 0.0
    %1429 = vmatprep.subr.mxu0 0.0
    %1430 = vmatpush1.msra.mxu0 0.0
    %1431 = vmatprep.subr.mxu0 0.0
    %1432 = vmatpush1.msra.mxu0 0.0
    %1433 = vmatprep.subr.mxu0 0.0
    %1434 = vmatpush1.msra.mxu0 0.0
    %1435 = vmatprep.subr.mxu0 0.0
    %1436 = vmatpush1.msra.mxu0 0.0
    %1437 = vmatprep.subr.mxu0 0.0
    %1438 = vmatpush1.msra.mxu0 0.0
    %1439 = vmatprep.subr.mxu0 0.0
    %1440 = vmatpush1.msra.mxu0 0.0
    %1441 = vmatprep.subr.mxu0 0.0
    %1442 = vmatpush1.msra.mxu0 0.0
    %1443 = vmatprep.subr.mxu0 0.0
    %1444 = vmatpush1.msra.mxu0 0.0
    %1445 = vmatprep.subr.mxu0 0.0
    %1446 = vmatpush1.msra.mxu0 0.0
    %1447 = vmatprep.subr.mxu0 0.0
    %1448 = vmatpush1.msra.mxu0 0.0
    %1449 = vmatprep.subr.mxu0 0.0
    %1450 = vmatpush1.msra.mxu0 0.0
    %1451 = vmatprep.subr.mxu0 0.0
    %1452 = vmatpush1.msra.mxu0 0.0
    %1453 = vmatprep.subr.mxu0 0.0
    %1454 = vmatpush1.msra.mxu0 0.0
    %1455 = vmatprep.subr.mxu0 0.0
    %1456 = vmatpush1.msra.mxu0 0.0
    %1457 = vmatprep.subr.mxu0 0.0
    %1458 = vmatpush1.msra.mxu0 0.0
    %1459 = vmatprep.subr.mxu0 0.0
    %1460 = vmatpush1.msra.mxu0 0.0
    %1461 = vmatprep.subr.mxu0 0.0
    %1462 = vmatpush1.msra.mxu0 0.0
    %1463 = vmatprep.subr.mxu0 0.0
    %1464 = vmatpush1.msra.mxu0 0.0
    %1465 = vmatprep.subr.mxu0 0.0
    %1466 = vmatpush1.msra.mxu0 0.0
    %1467 = vmatprep.subr.mxu0 0.0
    %1468 = vmatpush1.msra.mxu0 0.0
    %1469 = vmatprep.mubr.f32.mxu0 0.0
    %1470 = vmatmul.mubr.f32.gmra.mrb[0].mxu0 %v1397
    %v1471 = vpop.f32.mrb[0].mxu0
    %v1472 = vadd.f32 %v207, %v1471
    %v1473 = vpop.f32.mrb[0].mxu0
    %1474 = vmatprep.mubr.f32.mxu0 0.0
    %1475 = vmatmul.mubr.f32.gmra.mrb[0].mxu0 %v1400
    %v1476 = vpop.f32.mrb[0].mxu0
    %v1477 = vadd.f32 %v208, %v1476
    %v1478 = vpop.f32.mrb[0].mxu0
    %1479 = vmatprep.mubr.f32.mxu0 0.0
    %1480 = vmatmul.mubr.f32.gmra.mrb[0].mxu0 %v1403
    %v1481 = vpop.f32.mrb[0].mxu0
    %v1482 = vadd.f32 %v209, %v1481
    %v1483 = vpop.f32.mrb[0].mxu0
    %1484 = vdwg.mxu0
    %v1485 = vsel %vm65, %v1472, 0.0
    %1486 = vadd.xlane.f32.xlu0 %v1485
    %v1487 = vpop.xlane.xlu0 %1486
    %v1488 = vsel %vm65, %v1477, 0.0
    %1489 = vadd.xlane.f32.xlu0 %v1488
    %v1490 = vpop.xlane.xlu0 %1489
    %v1491 = vsel %vm161, %v1482, 0.0
    %1492 = vadd.xlane.f32.xlu0 %v1491
    %v1493 = vpop.xlane.xlu0 %1492
    %v1494 = vmul.f32 %v1487, %v165
    %v1495 = vmul.f32 %v1490, %v165
    %v1496 = vmul.f32 %v1493, %v165
    %v1497 = vsub.f32 %v1472, %v1494
    %v1498 = vsub.f32 %v1477, %v1495
    %v1499 = vsub.f32 %v1482, %v1496
    %v1500 = vmul.f32 %v1497, %v1497
    %v1501 = vmul.f32 %v1498, %v1498
    %v1502 = vmul.f32 %v1499, %v1499
    %v1503 = vsel %vm65, %v1500, 0.0
    %1504 = vadd.xlane.f32.xlu0 %v1503
    %v1505 = vpop.xlane.xlu0 %1504
    %v1506 = vsel %vm65, %v1501, 0.0
    %1507 = vadd.xlane.f32.xlu0 %v1506
    %v1508 = vpop.xlane.xlu0 %1507
    %v1509 = vsel %vm161, %v1502, 0.0
    %1510 = vadd.xlane.f32.xlu0 %v1509
    %v1511 = vpop.xlane.xlu0 %1510
    %v1512 = vmul.f32 %v1505, %v165
    %v1513 = vmul.f32 %v1508, %v165
    %v1514 = vmul.f32 %v1511, %v165
    %v1515 = vadd.f32 %v1512, 1e-05
    %v1516 = vadd.f32 %v1513, 1e-05
    %v1517 = vadd.f32 %v1514, 1e-05
    %v1518 = vrsqrt.pop %v1515
    %v1519 = vrsqrt.pop %v1516
    %v1520 = vrsqrt.pop %v1517
    %v1521 = vmul.f32 %v1497, %v1518
    %v1522 = vmul.f32 %v1498, %v1519
    %v1523 = vmul.f32 %v1499, %v1520
    %v1524 = vlaneseq
    %v1525 = vshrl.u32 %v1524, 7
    %v1526 = vsub.s32 2, %v1525
    %v1527 = vrot.slane %v54, %v1526
    %v1528 = vmul.f32 %v1521, %v1527
    %v1529 = vmul.f32 %v1522, %v1527
    %v1530 = vmul.f32 %v1523, %v1527
    %v1531 = vlaneseq
    %v1532 = vshrl.u32 %v1531, 7
    %v1533 = vsub.s32 3, %v1532
    %v1534 = vrot.slane %v54, %v1533
    %v1535 = vadd.f32 %v1528, %v1534
    %v1536 = vadd.f32 %v1529, %v1534
    %v1537 = vadd.f32 %v1530, %v1534
    %1542 = vrot.lane.b32.xlu0 %v53, 96
    %v1543 = vpop.permute.xlu0 %1542
    %1544 = vrot.lane.b32.xlu0 %v56, 96
    %v1545 = vpop.permute.xlu0 %1544
    %1546 = vrot.lane.b32.xlu0 %v59, 96
    %v1547 = vpop.permute.xlu0 %1546
    %1548 = vrot.lane.b32.xlu0 %v61, 96
    %v1549 = vpop.permute.xlu0 %1548
    %v1555 = vsel %vm65, %v1535, 0
    %v1558 = vsel %vm65, %v1536, 0
    %v1561 = vsel %vm65, %v1537, 0
    %1563 = vmatprep.subr.mxu0 0.0
    %1564 = vmatpush1.msra.mxu0 %v1543
    %1565 = vmatprep.subr.mxu0 0.0
    %1566 = vmatpush1.msra.mxu0 %v1545
    %1567 = vmatprep.subr.mxu0 0.0
    %1568 = vmatpush1.msra.mxu0 %v1547
    %1569 = vmatprep.subr.mxu0 0.0
    %1570 = vmatpush1.msra.mxu0 %v1549
    %1571 = vmatprep.subr.mxu0 0.0
    %1572 = vmatpush1.msra.mxu0 0.0
    %1573 = vmatprep.subr.mxu0 0.0
    %1574 = vmatpush1.msra.mxu0 0.0
    %1575 = vmatprep.subr.mxu0 0.0
    %1576 = vmatpush1.msra.mxu0 0.0
    %1577 = vmatprep.subr.mxu0 0.0
    %1578 = vmatpush1.msra.mxu0 0.0
    %1579 = vmatprep.subr.mxu0 0.0
    %1580 = vmatpush1.msra.mxu0 0.0
    %1581 = vmatprep.subr.mxu0 0.0
    %1582 = vmatpush1.msra.mxu0 0.0
    %1583 = vmatprep.subr.mxu0 0.0
    %1584 = vmatpush1.msra.mxu0 0.0
    %1585 = vmatprep.subr.mxu0 0.0
    %1586 = vmatpush1.msra.mxu0 0.0
    %1587 = vmatprep.subr.mxu0 0.0
    %1588 = vmatpush1.msra.mxu0 0.0
    %1589 = vmatprep.subr.mxu0 0.0
    %1590 = vmatpush1.msra.mxu0 0.0
    %1591 = vmatprep.subr.mxu0 0.0
    %1592 = vmatpush1.msra.mxu0 0.0
    %1593 = vmatprep.subr.mxu0 0.0
    %1594 = vmatpush1.msra.mxu0 0.0
    %1595 = vmatprep.subr.mxu0 0.0
    %1596 = vmatpush1.msra.mxu0 0.0
    %1597 = vmatprep.subr.mxu0 0.0
    %1598 = vmatpush1.msra.mxu0 0.0
    %1599 = vmatprep.subr.mxu0 0.0
    %1600 = vmatpush1.msra.mxu0 0.0
    %1601 = vmatprep.subr.mxu0 0.0
    %1602 = vmatpush1.msra.mxu0 0.0
    %1603 = vmatprep.subr.mxu0 0.0
    %1604 = vmatpush1.msra.mxu0 0.0
    %1605 = vmatprep.subr.mxu0 0.0
    %1606 = vmatpush1.msra.mxu0 0.0
    %1607 = vmatprep.subr.mxu0 0.0
    %1608 = vmatpush1.msra.mxu0 0.0
    %1609 = vmatprep.subr.mxu0 0.0
    %1610 = vmatpush1.msra.mxu0 0.0
    %1611 = vmatprep.subr.mxu0 0.0
    %1612 = vmatpush1.msra.mxu0 0.0
    %1613 = vmatprep.subr.mxu0 0.0
    %1614 = vmatpush1.msra.mxu0 0.0
    %1615 = vmatprep.subr.mxu0 0.0
    %1616 = vmatpush1.msra.mxu0 0.0
    %1617 = vmatprep.subr.mxu0 0.0
    %1618 = vmatpush1.msra.mxu0 0.0
    %1619 = vmatprep.subr.mxu0 0.0
    %1620 = vmatpush1.msra.mxu0 0.0
    %1621 = vmatprep.subr.mxu0 0.0
    %1622 = vmatpush1.msra.mxu0 0.0
    %1623 = vmatprep.subr.mxu0 0.0
    %1624 = vmatpush1.msra.mxu0 0.0
    %1625 = vmatprep.subr.mxu0 0.0
    %1626 = vmatpush1.msra.mxu0 0.0
    %1627 = vmatprep.mubr.f32.mxu0 0.0
    %1628 = vmatmul.mubr.f32.gmra.mrb[0].mxu0 %v1555
    %v1629 = vpop.f32.mrb[0].mxu0
    %v1630 = vadd.f32 0.0, %v1629
    %v1631 = vpop.f32.mrb[0].mxu0
    %1632 = vmatprep.mubr.f32.mxu0 0.0
    %1633 = vmatmul.mubr.f32.gmra.mrb[0].mxu0 %v1558
    %v1634 = vpop.f32.mrb[0].mxu0
    %v1635 = vadd.f32 0.0, %v1634
    %v1636 = vpop.f32.mrb[0].mxu0
    %1637 = vmatprep.mubr.f32.mxu0 0.0
    %1638 = vmatmul.mubr.f32.gmra.mrb[0].mxu0 %v1561
    %v1639 = vpop.f32.mrb[0].mxu0
    %v1640 = vadd.f32 0.0, %v1639
    %v1641 = vpop.f32.mrb[0].mxu0
    %1642 = vdwg.mxu0
    %v1643 = vadd.f32 %v1630, %v1535
    %v1644 = vadd.f32 %v1635, %v1536
    %v1645 = vadd.f32 %v1640, %v1537
    %v1646 = vsel %vm65, %v1643, 0.0
    %1647 = vadd.xlane.f32.xlu0 %v1646
    %v1648 = vpop.xlane.xlu0 %1647
    %v1649 = vsel %vm65, %v1644, 0.0
    %1650 = vadd.xlane.f32.xlu0 %v1649
    %v1651 = vpop.xlane.xlu0 %1650
    %v1652 = vsel %vm161, %v1645, 0.0
    %1653 = vadd.xlane.f32.xlu0 %v1652
    %v1654 = vpop.xlane.xlu0 %1653
    %v1655 = vmul.f32 %v1648, %v165
    %v1656 = vmul.f32 %v1651, %v165
    %v1657 = vmul.f32 %v1654, %v165
    %v1658 = vsub.f32 %v1643, %v1655
    %v1659 = vsub.f32 %v1644, %v1656
    %v1660 = vsub.f32 %v1645, %v1657
    %v1661 = vmul.f32 %v1658, %v1658
    %v1662 = vmul.f32 %v1659, %v1659
    %v1663 = vmul.f32 %v1660, %v1660
    %v1664 = vsel %vm65, %v1661, 0.0
    %1665 = vadd.xlane.f32.xlu0 %v1664
    %v1666 = vpop.xlane.xlu0 %1665
    %v1667 = vsel %vm65, %v1662, 0.0
    %1668 = vadd.xlane.f32.xlu0 %v1667
    %v1669 = vpop.xlane.xlu0 %1668
    %v1670 = vsel %vm161, %v1663, 0.0
    %1671 = vadd.xlane.f32.xlu0 %v1670
    %v1672 = vpop.xlane.xlu0 %1671
    %v1673 = vmul.f32 %v1666, %v165
    %v1674 = vmul.f32 %v1669, %v165
    %v1675 = vmul.f32 %v1672, %v165
    %v1676 = vadd.f32 %v1673, 1e-05
    %v1677 = vadd.f32 %v1674, 1e-05
    %v1678 = vadd.f32 %v1675, 1e-05
    %v1679 = vrsqrt.pop %v1676
    %v1680 = vrsqrt.pop %v1677
    %v1681 = vrsqrt.pop %v1678
    %v1682 = vmul.f32 %v1658, %v1679
    %v1683 = vmul.f32 %v1659, %v1680
    %v1684 = vmul.f32 %v1660, %v1681
    %v1685 = vlaneseq
    %v1686 = vshrl.u32 %v1685, 7
    %v1687 = vsub.s32 4, %v1686
    %v1688 = vrot.slane %v54, %v1687
    %v1689 = vmul.f32 %v1682, %v1688
    %v1690 = vmul.f32 %v1683, %v1688
    %v1691 = vmul.f32 %v1684, %v1688
    %v1692 = vlaneseq
    %v1693 = vshrl.u32 %v1692, 7
    %v1694 = vsub.s32 5, %v1693
    %v1695 = vrot.slane %v54, %v1694
    %v1696 = vadd.f32 %v1689, %v1695
    %v1697 = vadd.f32 %v1690, %v1695
    %v1698 = vadd.f32 %v1691, %v1695
    %v1699 = vlaneseq
    %v1700 = vshrl.u32 %v1699, 7
    %v1701 = vsub.s32 0, %v1700
    %v1702 = vrot.slane %v57, %v1701
    %1703 = vrot.lane.b32.xlu0 %v53, 64
    %v1704 = vpop.permute.xlu0 %1703
    %1705 = vrot.lane.b32.xlu0 %v56, 64
    %v1706 = vpop.permute.xlu0 %1705
    %1707 = vrot.lane.b32.xlu0 %v59, 64
    %v1708 = vpop.permute.xlu0 %1707
    %1709 = vrot.lane.b32.xlu0 %v61, 64
    %v1710 = vpop.permute.xlu0 %1709
    %v1716 = vsel %vm65, %v1696, 0
    %v1719 = vsel %vm65, %v1697, 0
    %v1722 = vsel %vm65, %v1698, 0
    %1724 = vmatprep.subr.mxu0 0.0
    %1725 = vmatpush1.msra.mxu0 %v1704
    %1726 = vmatprep.subr.mxu0 0.0
    %1727 = vmatpush1.msra.mxu0 %v1706
    %1728 = vmatprep.subr.mxu0 0.0
    %1729 = vmatpush1.msra.mxu0 %v1708
    %1730 = vmatprep.subr.mxu0 0.0
    %1731 = vmatpush1.msra.mxu0 %v1710
    %1732 = vmatprep.subr.mxu0 0.0
    %1733 = vmatpush1.msra.mxu0 0.0
    %1734 = vmatprep.subr.mxu0 0.0
    %1735 = vmatpush1.msra.mxu0 0.0
    %1736 = vmatprep.subr.mxu0 0.0
    %1737 = vmatpush1.msra.mxu0 0.0
    %1738 = vmatprep.subr.mxu0 0.0
    %1739 = vmatpush1.msra.mxu0 0.0
    %1740 = vmatprep.subr.mxu0 0.0
    %1741 = vmatpush1.msra.mxu0 0.0
    %1742 = vmatprep.subr.mxu0 0.0
    %1743 = vmatpush1.msra.mxu0 0.0
    %1744 = vmatprep.subr.mxu0 0.0
    %1745 = vmatpush1.msra.mxu0 0.0
    %1746 = vmatprep.subr.mxu0 0.0
    %1747 = vmatpush1.msra.mxu0 0.0
    %1748 = vmatprep.subr.mxu0 0.0
    %1749 = vmatpush1.msra.mxu0 0.0
    %1750 = vmatprep.subr.mxu0 0.0
    %1751 = vmatpush1.msra.mxu0 0.0
    %1752 = vmatprep.subr.mxu0 0.0
    %1753 = vmatpush1.msra.mxu0 0.0
    %1754 = vmatprep.subr.mxu0 0.0
    %1755 = vmatpush1.msra.mxu0 0.0
    %1756 = vmatprep.subr.mxu0 0.0
    %1757 = vmatpush1.msra.mxu0 0.0
    %1758 = vmatprep.subr.mxu0 0.0
    %1759 = vmatpush1.msra.mxu0 0.0
    %1760 = vmatprep.subr.mxu0 0.0
    %1761 = vmatpush1.msra.mxu0 0.0
    %1762 = vmatprep.subr.mxu0 0.0
    %1763 = vmatpush1.msra.mxu0 0.0
    %1764 = vmatprep.subr.mxu0 0.0
    %1765 = vmatpush1.msra.mxu0 0.0
    %1766 = vmatprep.subr.mxu0 0.0
    %1767 = vmatpush1.msra.mxu0 0.0
    %1768 = vmatprep.subr.mxu0 0.0
    %1769 = vmatpush1.msra.mxu0 0.0
    %1770 = vmatprep.subr.mxu0 0.0
    %1771 = vmatpush1.msra.mxu0 0.0
    %1772 = vmatprep.subr.mxu0 0.0
    %1773 = vmatpush1.msra.mxu0 0.0
    %1774 = vmatprep.subr.mxu0 0.0
    %1775 = vmatpush1.msra.mxu0 0.0
    %1776 = vmatprep.subr.mxu0 0.0
    %1777 = vmatpush1.msra.mxu0 0.0
    %1778 = vmatprep.subr.mxu0 0.0
    %1779 = vmatpush1.msra.mxu0 0.0
    %1780 = vmatprep.subr.mxu0 0.0
    %1781 = vmatpush1.msra.mxu0 0.0
    %1782 = vmatprep.subr.mxu0 0.0
    %1783 = vmatpush1.msra.mxu0 0.0
    %1784 = vmatprep.subr.mxu0 0.0
    %1785 = vmatpush1.msra.mxu0 0.0
    %1786 = vmatprep.subr.mxu0 0.0
    %1787 = vmatpush1.msra.mxu0 0.0
    %1788 = vmatprep.mubr.f32.mxu0 0.0
    %1789 = vmatmul.mubr.f32.gmra.mrb[0].mxu0 %v1716
    %v1790 = vpop.f32.mrb[0].mxu0
    %v1791 = vadd.f32 %v1702, %v1790
    %v1792 = vpop.f32.mrb[0].mxu0
    %1793 = vmatprep.mubr.f32.mxu0 0.0
    %1794 = vmatmul.mubr.f32.gmra.mrb[0].mxu0 %v1719
    %v1795 = vpop.f32.mrb[0].mxu0
    %v1796 = vadd.f32 %v1702, %v1795
    %v1797 = vpop.f32.mrb[0].mxu0
    %1798 = vmatprep.mubr.f32.mxu0 0.0
    %1799 = vmatmul.mubr.f32.gmra.mrb[0].mxu0 %v1722
    %v1800 = vpop.f32.mrb[0].mxu0
    %v1801 = vadd.f32 %v1702, %v1800
    %v1802 = vpop.f32.mrb[0].mxu0
    %1803 = vdwg.mxu0
    %v1804 = vmul.f32 %v1791, 0.5
    %v1805 = vmul.f32 %v1796, 0.5
    %v1806 = vmul.f32 %v1801, 0.5
    %v1807 = vmul.f32 %v1791, 0.70710677
    %v1808 = vmul.f32 %v1796, 0.70710677
    %v1809 = vmul.f32 %v1801, 0.70710677
    %vm1810 = vcmp.ge.f32.partialorder %v1807, 0.0
    %vm1811 = vcmp.ge.f32.partialorder %v1808, 0.0
    %vm1812 = vcmp.ge.f32.partialorder %v1809, 0.0
    %v1813 = vsel %vm1810, 1.0, -1.0
    %v1814 = vsel %vm1811, 1.0, -1.0
    %v1815 = vsel %vm1812, 1.0, -1.0
    %v1816 = vand.u32 2147483647, %v1807
    %v1817 = vand.u32 2147483647, %v1808
    %v1818 = vand.u32 2147483647, %v1809
    %v1819 = vmul.f32 %v1816, 0.3275911
    %v1820 = vmul.f32 %v1817, 0.3275911
    %v1821 = vmul.f32 %v1818, 0.3275911
    %v1822 = vadd.f32 %v1819, 1.0
    %v1823 = vadd.f32 %v1820, 1.0
    %v1824 = vadd.f32 %v1821, 1.0
    %v1825 = vrcp.pop %v1822
    %v1826 = vmul.f32 1.0, %v1825
    %v1827 = vrcp.pop %v1823
    %v1828 = vmul.f32 1.0, %v1827
    %v1829 = vrcp.pop %v1824
    %v1830 = vmul.f32 1.0, %v1829
    %v1831 = vmul.f32 %v1826, 1.0614054
    %v1832 = vmul.f32 %v1828, 1.0614054
    %v1833 = vmul.f32 %v1830, 1.0614054
    %v1834 = vadd.f32 %v1831, -1.4531521
    %v1835 = vadd.f32 %v1832, -1.4531521
    %v1836 = vadd.f32 %v1833, -1.4531521
    %v1837 = vmul.f32 %v1834, %v1826
    %v1838 = vmul.f32 %v1835, %v1828
    %v1839 = vmul.f32 %v1836, %v1830
    %v1840 = vadd.f32 %v1837, 1.4214138
    %v1841 = vadd.f32 %v1838, 1.4214138
    %v1842 = vadd.f32 %v1839, 1.4214138
    %v1843 = vmul.f32 %v1840, %v1826
    %v1844 = vmul.f32 %v1841, %v1828
    %v1845 = vmul.f32 %v1842, %v1830
    %v1846 = vadd.f32 %v1843, -0.28449672
    %v1847 = vadd.f32 %v1844, -0.28449672
    %v1848 = vadd.f32 %v1845, -0.28449672
    %v1849 = vmul.f32 %v1846, %v1826
    %v1850 = vmul.f32 %v1847, %v1828
    %v1851 = vmul.f32 %v1848, %v1830
    %v1852 = vadd.f32 %v1849, 0.2548296
    %v1853 = vadd.f32 %v1850, 0.2548296
    %v1854 = vadd.f32 %v1851, 0.2548296
    %v1855 = vmul.f32 %v1852, %v1826
    %v1856 = vmul.f32 %v1853, %v1828
    %v1857 = vmul.f32 %v1854, %v1830
    %v1858 = vsub.f32 0.0, %v1816
    %v1859 = vsub.f32 0.0, %v1817
    %v1860 = vsub.f32 0.0, %v1818
    %v1861 = vmul.f32 %v1858, %v1816
    %v1862 = vmul.f32 %v1859, %v1817
    %v1863 = vmul.f32 %v1860, %v1818
    %v1864 = vmul.f32 %v1861, 1.442695
    %v1865 = vpow.pop %v1864
    %v1866 = vmul.f32 %v1862, 1.442695
    %v1867 = vpow.pop %v1866
    %v1868 = vmul.f32 %v1863, 1.442695
    %v1869 = vpow.pop %v1868
    %v1870 = vmul.f32 %v1855, %v1865
    %v1871 = vmul.f32 %v1856, %v1867
    %v1872 = vmul.f32 %v1857, %v1869
    %v1873 = vsub.f32 1.0, %v1870
    %v1874 = vsub.f32 1.0, %v1871
    %v1875 = vsub.f32 1.0, %v1872
    %v1876 = vmul.f32 %v1813, %v1873
    %v1877 = vmul.f32 %v1814, %v1874
    %v1878 = vmul.f32 %v1815, %v1875
    %v1879 = vadd.f32 %v1876, 1.0
    %v1880 = vadd.f32 %v1877, 1.0
    %v1881 = vadd.f32 %v1878, 1.0
    %v1882 = vmul.f32 %v1804, %v1879
    %v1883 = vmul.f32 %v1805, %v1880
    %v1884 = vmul.f32 %v1806, %v1881
    %v1885 = vld [vmem:[%s2] sm:$0xff]
    %v1886 = vld [vmem:[%s2 + $0x8] sm:$0xff]
    %v1887 = vld [vmem:[%s2 + $0x10] sm:$0xff]
    %v1888 = vld [vmem:[%s2 + $0x18] sm:$0xff]
    %v1889 = vld [vmem:[%s2 + $0x20] sm:$0xff]
    %v1890 = vld [vmem:[%s2 + $0x28] sm:$0xff]
    %v1891 = vld [vmem:[%s2 + $0x30] sm:$0xff]
    %v1892 = vld [vmem:[%s2 + $0x38] sm:$0xff]
    %v1893 = vlaneseq
    %v1894 = vshrl.u32 %v1893, 7
    %v1895 = vsub.s32 1, %v1894
    %v1896 = vrot.slane %v57, %v1895
    %vm1897 = vcmask 523264
    %v1899 = vsel %vm1897, %v1882, 0
    %v1902 = vsel %vm1897, %v1883, 0
    %v1905 = vsel %vm1897, %v1884, 0
    %1907 = vmatprep.subr.mxu0 0.0
    %1908 = vmatpush1.msra.mxu0 %v1885
    %1909 = vmatprep.subr.mxu0 0.0
    %1910 = vmatpush1.msra.mxu0 %v1886
    %1911 = vmatprep.subr.mxu0 0.0
    %1912 = vmatpush1.msra.mxu0 %v1887
    %1913 = vmatprep.subr.mxu0 0.0
    %1914 = vmatpush1.msra.mxu0 %v1888
    %1915 = vmatprep.subr.mxu0 0.0
    %1916 = vmatpush1.msra.mxu0 %v1889
    %1917 = vmatprep.subr.mxu0 0.0
    %1918 = vmatpush1.msra.mxu0 %v1890
    %1919 = vmatprep.subr.mxu0 0.0
    %1920 = vmatpush1.msra.mxu0 %v1891
    %1921 = vmatprep.subr.mxu0 0.0
    %1922 = vmatpush1.msra.mxu0 %v1892
    %1923 = vmatprep.subr.mxu0 0.0
    %1924 = vmatpush1.msra.mxu0 0.0
    %1925 = vmatprep.subr.mxu0 0.0
    %1926 = vmatpush1.msra.mxu0 0.0
    %1927 = vmatprep.subr.mxu0 0.0
    %1928 = vmatpush1.msra.mxu0 0.0
    %1929 = vmatprep.subr.mxu0 0.0
    %1930 = vmatpush1.msra.mxu0 0.0
    %1931 = vmatprep.subr.mxu0 0.0
    %1932 = vmatpush1.msra.mxu0 0.0
    %1933 = vmatprep.subr.mxu0 0.0
    %1934 = vmatpush1.msra.mxu0 0.0
    %1935 = vmatprep.subr.mxu0 0.0
    %1936 = vmatpush1.msra.mxu0 0.0
    %1937 = vmatprep.subr.mxu0 0.0
    %1938 = vmatpush1.msra.mxu0 0.0
    %1939 = vmatprep.subr.mxu0 0.0
    %1940 = vmatpush1.msra.mxu0 0.0
    %1941 = vmatprep.subr.mxu0 0.0
    %1942 = vmatpush1.msra.mxu0 0.0
    %1943 = vmatprep.subr.mxu0 0.0
    %1944 = vmatpush1.msra.mxu0 0.0
    %1945 = vmatprep.subr.mxu0 0.0
    %1946 = vmatpush1.msra.mxu0 0.0
    %1947 = vmatprep.subr.mxu0 0.0
    %1948 = vmatpush1.msra.mxu0 0.0
    %1949 = vmatprep.subr.mxu0 0.0
    %1950 = vmatpush1.msra.mxu0 0.0
    %1951 = vmatprep.subr.mxu0 0.0
    %1952 = vmatpush1.msra.mxu0 0.0
    %1953 = vmatprep.subr.mxu0 0.0
    %1954 = vmatpush1.msra.mxu0 0.0
    %1955 = vmatprep.subr.mxu0 0.0
    %1956 = vmatpush1.msra.mxu0 0.0
    %1957 = vmatprep.subr.mxu0 0.0
    %1958 = vmatpush1.msra.mxu0 0.0
    %1959 = vmatprep.subr.mxu0 0.0
    %1960 = vmatpush1.msra.mxu0 0.0
    %1961 = vmatprep.subr.mxu0 0.0
    %1962 = vmatpush1.msra.mxu0 0.0
    %1963 = vmatprep.subr.mxu0 0.0
    %1964 = vmatpush1.msra.mxu0 0.0
    %1965 = vmatprep.subr.mxu0 0.0
    %1966 = vmatpush1.msra.mxu0 0.0
    %1967 = vmatprep.subr.mxu0 0.0
    %1968 = vmatpush1.msra.mxu0 0.0
    %1969 = vmatprep.subr.mxu0 0.0
    %1970 = vmatpush1.msra.mxu0 0.0
    %1971 = vmatprep.mubr.f32.mxu0 0.0
    %1972 = vmatmul.mubr.f32.gmra.mrb[0].mxu0 %v1899
    %v1973 = vpop.f32.mrb[0].mxu0
    %v1974 = vadd.f32 %v1896, %v1973
    %v1975 = vpop.f32.mrb[0].mxu0
    %1976 = vmatprep.mubr.f32.mxu0 0.0
    %1977 = vmatmul.mubr.f32.gmra.mrb[0].mxu0 %v1902
    %v1978 = vpop.f32.mrb[0].mxu0
    %v1979 = vadd.f32 %v1896, %v1978
    %v1980 = vpop.f32.mrb[0].mxu0
    %1981 = vmatprep.mubr.f32.mxu0 0.0
    %1982 = vmatmul.mubr.f32.gmra.mrb[0].mxu0 %v1905
    %v1983 = vpop.f32.mrb[0].mxu0
    %v1984 = vadd.f32 %v1896, %v1983
    %v1985 = vpop.f32.mrb[0].mxu0
    %1986 = vdwg.mxu0
    %v1987 = vadd.f32 %v1974, %v1696
    %v1988 = vadd.f32 %v1979, %v1697
    %v1989 = vadd.f32 %v1984, %v1698
    %v1990 = vsel %vm65, %v1987, 0.0
    %1991 = vadd.xlane.f32.xlu0 %v1990
    %v1992 = vpop.xlane.xlu0 %1991
    %v1993 = vsel %vm65, %v1988, 0.0
    %1994 = vadd.xlane.f32.xlu0 %v1993
    %v1995 = vpop.xlane.xlu0 %1994
    %v1996 = vsel %vm161, %v1989, 0.0
    %1997 = vadd.xlane.f32.xlu0 %v1996
    %v1998 = vpop.xlane.xlu0 %1997
    %v1999 = vmul.f32 %v1992, %v165
    %v2000 = vmul.f32 %v1995, %v165
    %v2001 = vmul.f32 %v1998, %v165
    %v2002 = vsub.f32 %v1987, %v1999
    %v2003 = vsub.f32 %v1988, %v2000
    %v2004 = vsub.f32 %v1989, %v2001
    %v2005 = vmul.f32 %v2002, %v2002
    %v2006 = vmul.f32 %v2003, %v2003
    %v2007 = vmul.f32 %v2004, %v2004
    %v2008 = vsel %vm65, %v2005, 0.0
    %2009 = vadd.xlane.f32.xlu0 %v2008
    %v2010 = vpop.xlane.xlu0 %2009
    %v2011 = vsel %vm65, %v2006, 0.0
    %2012 = vadd.xlane.f32.xlu0 %v2011
    %v2013 = vpop.xlane.xlu0 %2012
    %v2014 = vsel %vm161, %v2007, 0.0
    %2015 = vadd.xlane.f32.xlu0 %v2014
    %v2016 = vpop.xlane.xlu0 %2015
    %v2017 = vmul.f32 %v2010, %v165
    %v2018 = vmul.f32 %v2013, %v165
    %v2019 = vmul.f32 %v2016, %v165
    %v2020 = vadd.f32 %v2017, 1e-05
    %v2021 = vadd.f32 %v2018, 1e-05
    %v2022 = vadd.f32 %v2019, 1e-05
    %v2023 = vrsqrt.pop %v2020
    %v2024 = vrsqrt.pop %v2021
    %v2025 = vrsqrt.pop %v2022
    %v2026 = vmul.f32 %v2002, %v2023
    %v2027 = vmul.f32 %v2003, %v2024
    %v2028 = vmul.f32 %v2004, %v2025
    %v2029 = vlaneseq
    %v2030 = vshrl.u32 %v2029, 7
    %v2031 = vsub.s32 6, %v2030
    %v2032 = vrot.slane %v54, %v2031
    %v2033 = vmul.f32 %v2026, %v2032
    %v2034 = vmul.f32 %v2027, %v2032
    %v2035 = vmul.f32 %v2028, %v2032
    %v2036 = vlaneseq
    %v2037 = vshrl.u32 %v2036, 7
    %v2038 = vsub.s32 7, %v2037
    %v2039 = vrot.slane %v54, %v2038
    %v2040 = vadd.f32 %v2033, %v2039
    %v2041 = vadd.f32 %v2034, %v2039
    %v2042 = vadd.f32 %v2035, %v2039
    %2043 = vst.msk [vmem:[#allocation7] sm:$0xff] %vm65, %v2040
    %2044 = vst.msk [vmem:[#allocation7 + $0x8] sm:$0xff] %vm65, %v2041
    %2045 = vst.msk [vmem:[#allocation7 + $0x10] sm:$0x3] %vm161, %v2042
    %vm2046 = vcmask 1040384
    %v2047 = vsel %vm2046, %v1635, %v1640
    %2048 = vst.msk [vmem:[#allocation8] sm:$0x3] %vm161, %v2047
    // Predicated region
    $region26: #{tpu_custom_call.1} parent=1 // pred_check
      _
    $region27: #{tpu_custom_call.1} parent=1 // pred_check_branch
      %2050 = sbr.rel (0) target = $region29
    $region28: #{tpu_custom_call.1} parent=1 // pred_region
      %s2052 = ssub.s32 384, 384
      %2053 = vsyncadd [#allocation4], %s2052
      %s2054 = sshll.u32 [#allocation7], 4
      %s2055 = int_to_ptr.vmem [resolvable:$true] %s2054
      %2060 = dma.vmem_to_hbm [thread:$0]  %s2055, 384, %s4, [#allocation4], 128, 128, 8
    $region29: #{tpu_custom_call.1} parent=1 // pred_fallthru
      _
    // Predicated region
    $region30: #{tpu_custom_call.1} parent=1 // pred_check
      _
    $region31: #{tpu_custom_call.1} parent=1 // pred_check_branch
      %2062 = sbr.rel (0) target = $region33
    $region32: #{tpu_custom_call.1} parent=1 // pred_region
      %s2064 = ssub.s32 32, 32
      %2065 = vsyncadd [#allocation9], %s2064
      %s2067 = sshll.u32 [#allocation8], 4
      %s2068 = int_to_ptr.vmem [resolvable:$true] %s2067
      %2070 = dma.vmem_to_hbm [thread:$0]  %s2068, 32, %s5, [#allocation9]
    $region33: #{tpu_custom_call.1} parent=1 // pred_fallthru
      _
    // Predicated region
    $region34: #{tpu_custom_call.1} parent=1 // pred_check
      _
    $region35: #{tpu_custom_call.1} parent=1 // pred_check_branch
      %2072 = sbr.rel (0) target = $region37
    $region36: #{tpu_custom_call.1} parent=1 // pred_region
      %2073 = dma.done [#allocation4], 384
    $region37: #{tpu_custom_call.1} parent=1 // pred_fallthru
      _
    // Predicated region
    $region38: #{tpu_custom_call.1} parent=1 // pred_check
      _
    $region39: #{tpu_custom_call.1} parent=1 // pred_check_branch
      %2075 = sbr.rel (0) target = $region41
    $region40: #{tpu_custom_call.1} parent=1 // pred_region
      %2076 = dma.done [#allocation9], 32
    $region41: #{tpu_custom_call.1} parent=1 // pred_fallthru
      _
    %2077 = vsyncpa [#allocation3], 1
    %2078 = vsyncpa [#allocation6], 1
    %2079 = vsyncpa [#allocation4], 1
    %2080 = vsyncpa [#allocation9], 1

</llo_original>
